<compile_context>
chip_gen: v7x
topology: tpu7x:2x2x1
jax: 0.10.0
libtpu: 0.0.40
codegen_flags: <defaults>
</compile_context>

<pallas_src>
import math

import jax
import jax.numpy as jnp
from jax.experimental import pallas as pl
from jax.experimental.pallas import tpu as pltpu

HIDDEN = 128
NUM_HEADS = 8
HEAD_SIZE = HIDDEN // NUM_HEADS  # 16


def mhsa_kernel(x_ref, wqkv_ref, bqkv_ref, wfc_ref, bfc_ref, mask_ref, o_ref):
    Bb, S, H = x_ref.shape
    M = Bb * S
    NH, HD = NUM_HEADS, HEAD_SIZE
    scale = 1.0 / math.sqrt(HD)

    # ---- fused QKV projection on the flattened (Bb*S, H) row slab ----------
    x2 = x_ref[...].reshape(M, H)
    qkv = jnp.dot(x2, wqkv_ref[...], preferred_element_type=jnp.float32) + bqkv_ref[...]

    # lane slices at multiples of 128 -> clean vreg boundaries
    q = qkv[:, :H].reshape(Bb, 1, S, H)
    k = qkv[:, H:2 * H].reshape(Bb, 1, S, H)
    v = qkv[:, 2 * H:].reshape(Bb, 1, S, H)

    # ---- head-select lane mask: mask[0, h, 0, d] = 1 iff d // HD == h -------
    mask = mask_ref[...]                      # (1, NH, 1, H)

    qg = (q * mask).reshape(Bb * NH, S, H)    # (G, S, H) head-h lanes only
    kg = (k * mask).reshape(Bb * NH, S, H)
    vg = (v * mask).reshape(Bb * NH, S, H)

    # ---- batched scaled-dot-product attention over G = Bb*NH groups --------
    # contraction over the full H lanes is exact: non-head lanes are zero.
    scores = jnp.einsum("gsd,gtd->gst", qg, kg,
                        preferred_element_type=jnp.float32) * scale   # (G, S, S)
    m_ = jnp.max(scores, axis=-1, keepdims=True)
    p = jnp.exp(scores - m_)
    p = p * pl.reciprocal(jnp.sum(p, axis=-1, keepdims=True), approx=True)
    # dropout(p) is identity in eval mode.
    ctx_g = jnp.einsum("gst,gtd->gsd", p, vg,
                       preferred_element_type=jnp.float32)            # (G, S, H)

    # per-head contexts occupy disjoint lanes -> summing over the head axis
    # IS the "transpose + view(B,S,H)" concat, and it is lane-dense.
    ctx = ctx_g.reshape(Bb, NH, S, H).sum(axis=1).reshape(M, H)

    # ---- output projection --------------------------------------------------
    out = jnp.dot(ctx, wfc_ref[...], preferred_element_type=jnp.float32) + bfc_ref[...]
    o_ref[...] = out.reshape(Bb, S, H).astype(o_ref.dtype)


def _choose_block_b(B, S, target_rows=256):
    """Largest divisor of B with Bb*S <= target_rows (fill MXU rows), but keep
    >= 2 grid steps when possible so both v7x TensorCores get work."""
    divisors = [d for d in range(1, B + 1) if B % d == 0]
    fits = [d for d in divisors if d * S <= target_rows] or [1]
    bb = max(fits)
    multi = [d for d in fits if B // d >= 2]
    if B // bb < 2 and multi:
        bb = max(multi)
    return bb


def _head_mask():
    d = jnp.arange(HIDDEN) // HEAD_SIZE                      # (H,)
    h = jnp.arange(NUM_HEADS)                                # (NH,)
    m = (d[None, :] == h[:, None]).astype(jnp.float32)       # (NH, H)
    return m.reshape(1, NUM_HEADS, 1, HIDDEN)


def multi_head_self_attention(x, params):
    """x: (B, S, H) float32.  params: dict of (H_in, H_out) weights and (1, H) biases."""
    B, S, H = x.shape
    assert H == HIDDEN

    bb = _choose_block_b(B, S)

    # Fused QKV weight/bias, built once outside the kernel.
    wqkv = jnp.concatenate([params["wq"], params["wk"], params["wv"]], axis=1)  # (H, 3H)
    bqkv = jnp.concatenate([params["bq"], params["bk"], params["bv"]], axis=1)  # (1, 3H)
    mask = _head_mask()                                                          # (1, NH, 1, H)

    return pl.pallas_call(
        mhsa_kernel,
        out_shape=jax.ShapeDtypeStruct((B, S, H), x.dtype),
        grid_spec=pltpu.PrefetchScalarGridSpec(
            num_scalar_prefetch=0,
            grid=(B // bb,),
            in_specs=[
                pl.BlockSpec((bb, S, H), lambda b: (b, 0, 0)),                    # x block
                pl.BlockSpec((H, 3 * H), lambda b: (0, 0)),                       # Wqkv
                pl.BlockSpec((1, 3 * H), lambda b: (0, 0)),                       # bqkv
                pl.BlockSpec((H, H), lambda b: (0, 0)),                           # Wfc
                pl.BlockSpec((1, H), lambda b: (0, 0)),                           # bfc
                pl.BlockSpec((1, NUM_HEADS, 1, H), lambda b: (0, 0, 0, 0)),       # head mask
            ],
            out_specs=pl.BlockSpec((bb, S, H), lambda b: (b, 0, 0)),
        ),
        compiler_params=pltpu.CompilerParams(
            dimension_semantics=("parallel",),
            vmem_limit_bytes=32 * 1024 * 1024,
        ),
    )(x, wqkv, bqkv, params["wfc"], params["bfc"], mask)


def reference(x, params):
    """Pure-JAX reference mirroring the PyTorch forward (eval mode, no mask)."""
    B, S, H = x.shape
    nh, hd = NUM_HEADS, HEAD_SIZE

    def lin(t, w, b):
        return t @ w + b  # w already (H_in, H_out)

    q = lin(x, params["wq"], params["bq"]).reshape(B, S, nh, hd).transpose(0, 2, 1, 3)
    k = lin(x, params["wk"], params["bk"]).reshape(B, S, nh, hd).transpose(0, 2, 1, 3)
    v = lin(x, params["wv"], params["bv"]).reshape(B, S, nh, hd).transpose(0, 2, 1, 3)

    scores = jnp.einsum("bhqd,bhkd->bhqk", q, k) / math.sqrt(hd)
    attn = jax.nn.softmax(scores, axis=-1)
    ctx = jnp.einsum("bhqk,bhkd->bhqd", attn, v)
    ctx = ctx.transpose(0, 2, 1, 3).reshape(B, S, H)
    return lin(ctx, params["wfc"], params["bfc"])


def init_params(key):
    """Deterministic init; PyTorch nn.Linear weight is (out, in) — stored
    pre-transposed as (in, out) for the kernel."""
    ks = jax.random.split(key, 8)
    bound = 1.0 / math.sqrt(HIDDEN)

    def w(k):
        return jax.random.uniform(k, (HIDDEN, HIDDEN), jnp.float32, -bound, bound)

    def b(k):
        return jax.random.uniform(k, (1, HIDDEN), jnp.float32, -bound, bound)

    return {
        "wq": w(ks[0]), "bq": b(ks[1]),
        "wk": w(ks[2]), "bk": b(ks[3]),
        "wv": w(ks[4]), "bv": b(ks[5]),
        "wfc": w(ks[6]), "bfc": b(ks[7]),
    }


if __name__ == "__main__":
    key = jax.random.PRNGKey(0)
    k_x, k_p = jax.random.split(key)

    B, S = 2, 8
    x = jax.random.normal(k_x, (B, S, HIDDEN), jnp.float32)
    params = init_params(k_p)

    out = multi_head_self_attention(x, params)
    out = jax.block_until_ready(out)

    ref = reference(x, params)
    assert out.shape == (B, S, HIDDEN)
    # Tolerance covers the EUP approximate-reciprocal softmax normalization.
    assert jnp.allclose(out, ref, atol=2e-3, rtol=2e-3), "mismatch vs reference"

    print("KERNEL_OK")
</pallas_src>

<mosaic_0001>
module attributes {stable_mosaic.version = 11 : i64} {
  func.func @mhsa_kernel(%arg0: i32, %arg1: memref<1x8x128xf32, #tpu.memory_space<vmem>>, %arg2: memref<128x384xf32, #tpu.memory_space<vmem>>, %arg3: memref<1x384xf32, #tpu.memory_space<vmem>>, %arg4: memref<128x128xf32, #tpu.memory_space<vmem>>, %arg5: memref<1x128xf32, #tpu.memory_space<vmem>>, %arg6: memref<1x8x1x128xf32, #tpu.memory_space<vmem>>, %arg7: memref<1x8x128xf32, #tpu.memory_space<vmem>>) attributes {dimension_semantics = [#tpu.dimension_semantics<parallel>], iteration_bounds = array<i64: 2>, scalar_prefetch = 0 : i64, scratch_operands = 0 : i64, tpu.core_type = #tpu.core_type<tc>, window_params = [{transform_indices = @transform_0, window_bounds = array<i64: 1, 8, 128>}, {pipeline_mode = #tpu.pipeline_mode<synchronous>, transform_indices = @transform_1, window_bounds = array<i64: 128, 384>}, {pipeline_mode = #tpu.pipeline_mode<synchronous>, transform_indices = @transform_2, window_bounds = array<i64: 1, 384>}, {pipeline_mode = #tpu.pipeline_mode<synchronous>, transform_indices = @transform_3, window_bounds = array<i64: 128, 128>}, {pipeline_mode = #tpu.pipeline_mode<synchronous>, transform_indices = @transform_4, window_bounds = array<i64: 1, 128>}, {pipeline_mode = #tpu.pipeline_mode<synchronous>, transform_indices = @transform_5, window_bounds = array<i64: 1, 8, 1, 128>}, {transform_indices = @transform_6, window_bounds = array<i64: 1, 8, 128>}]} {
    %c0 = arith.constant 0 : index
    %c0_0 = arith.constant 0 : index
    %c0_1 = arith.constant 0 : index
    %0 = vector.load %arg1[%c0, %c0_0, %c0_1] : memref<1x8x128xf32, #tpu.memory_space<vmem>>, vector<1x8x128xf32>
    %1 = vector.shape_cast %0 : vector<1x8x128xf32> to vector<8x128xf32>
    %c0_2 = arith.constant 0 : index
    %c0_3 = arith.constant 0 : index
    %2 = vector.load %arg2[%c0_2, %c0_3] : memref<128x384xf32, #tpu.memory_space<vmem>>, vector<128x384xf32>
    %cst = arith.constant dense<0.000000e+00> : vector<8x384xf32>
    %3 = tpu.matmul %1, %2, %cst {dimension_numbers = #tpu.dot_dimension_numbers<[1], [0], [0], [1], [0, 0, 1, 1], [], []>} : vector<8x128xf32>, vector<128x384xf32>, vector<8x384xf32> -> vector<8x384xf32>
    %c0_4 = arith.constant 0 : index
    %c0_5 = arith.constant 0 : index
    %4 = vector.load %arg3[%c0_4, %c0_5] : memref<1x384xf32, #tpu.memory_space<vmem>>, vector<1x384xf32>
    %5 = vector.broadcast %4 : vector<1x384xf32> to vector<8x384xf32>
    %6 = arith.addf %3, %5 : vector<8x384xf32>
    %7 = vector.extract_strided_slice %6 {offsets = [0, 0], sizes = [8, 128], strides = [1, 1]} : vector<8x384xf32> to vector<8x128xf32>
    %8 = vector.shape_cast %7 : vector<8x128xf32> to vector<1x1x8x128xf32>
    %9 = vector.extract_strided_slice %6 {offsets = [0, 128], sizes = [8, 128], strides = [1, 1]} : vector<8x384xf32> to vector<8x128xf32>
    %10 = vector.shape_cast %9 : vector<8x128xf32> to vector<1x1x8x128xf32>
    %11 = vector.extract_strided_slice %6 {offsets = [0, 256], sizes = [8, 128], strides = [1, 1]} : vector<8x384xf32> to vector<8x128xf32>
    %12 = vector.shape_cast %11 : vector<8x128xf32> to vector<1x1x8x128xf32>
    %c0_6 = arith.constant 0 : index
    %c0_7 = arith.constant 0 : index
    %c0_8 = arith.constant 0 : index
    %c0_9 = arith.constant 0 : index
    %13 = vector.load %arg6[%c0_6, %c0_7, %c0_8, %c0_9] : memref<1x8x1x128xf32, #tpu.memory_space<vmem>>, vector<1x8x1x128xf32>
    %14 = vector.broadcast %8 : vector<1x1x8x128xf32> to vector<1x8x8x128xf32>
    %15 = vector.broadcast %13 : vector<1x8x1x128xf32> to vector<1x8x8x128xf32>
    %16 = arith.mulf %14, %15 : vector<1x8x8x128xf32>
    %17 = vector.shape_cast %16 : vector<1x8x8x128xf32> to vector<8x8x128xf32>
    %18 = vector.broadcast %10 : vector<1x1x8x128xf32> to vector<1x8x8x128xf32>
    %19 = vector.broadcast %13 : vector<1x8x1x128xf32> to vector<1x8x8x128xf32>
    %20 = arith.mulf %18, %19 : vector<1x8x8x128xf32>
    %21 = vector.shape_cast %20 : vector<1x8x8x128xf32> to vector<8x8x128xf32>
    %22 = vector.broadcast %12 : vector<1x1x8x128xf32> to vector<1x8x8x128xf32>
    %23 = vector.broadcast %13 : vector<1x8x1x128xf32> to vector<1x8x8x128xf32>
    %24 = arith.mulf %22, %23 : vector<1x8x8x128xf32>
    %25 = vector.shape_cast %24 : vector<1x8x8x128xf32> to vector<8x8x128xf32>
    "tpu.trace_start"() <{level = 10 : i32, message = "gsd,gtd->gst"}> : () -> ()
    %cst_10 = arith.constant dense<0.000000e+00> : vector<8x8x8xf32>
    %26 = tpu.matmul %17, %21, %cst_10 {dimension_numbers = #tpu.dot_dimension_numbers<[2], [2], [1], [1], [0, 0, 0, 1, 1, 1], [0], [0]>} : vector<8x8x128xf32>, vector<8x8x128xf32>, vector<8x8x8xf32> -> vector<8x8x8xf32>
    "tpu.trace_stop"() : () -> ()
    %cst_11 = arith.constant 2.500000e-01 : f32
    %27 = vector.broadcast %cst_11 : f32 to vector<8x8x8xf32>
    %28 = arith.mulf %26, %27 : vector<8x8x8xf32>
    %cst_12 = arith.constant dense<0xFF800000> : vector<8x8xf32>
    %29 = vector.multi_reduction <maximumf>, %28, %cst_12 [2] : vector<8x8x8xf32> to vector<8x8xf32>
    %30 = vector.shape_cast %29 : vector<8x8xf32> to vector<8x8x1xf32>
    %31 = vector.broadcast %30 : vector<8x8x1xf32> to vector<8x8x8xf32>
    %32 = arith.subf %28, %31 : vector<8x8x8xf32>
    %33 = math.exp %32 : vector<8x8x8xf32>
    %cst_13 = arith.constant dense<0.000000e+00> : vector<8x8xf32>
    %34 = vector.multi_reduction <add>, %33, %cst_13 [2] : vector<8x8x8xf32> to vector<8x8xf32>
    %35 = vector.shape_cast %34 : vector<8x8xf32> to vector<8x8x1xf32>
    %36 = tpu.reciprocal %35 {approx = true} : vector<8x8x1xf32> -> vector<8x8x1xf32>
    %37 = vector.broadcast %36 : vector<8x8x1xf32> to vector<8x8x8xf32>
    %38 = arith.mulf %33, %37 : vector<8x8x8xf32>
    "tpu.trace_start"() <{level = 10 : i32, message = "gst,gtd->gsd"}> : () -> ()
    %cst_14 = arith.constant dense<0.000000e+00> : vector<8x8x128xf32>
    %39 = tpu.matmul %38, %25, %cst_14 {dimension_numbers = #tpu.dot_dimension_numbers<[2], [1], [1], [2], [0, 0, 0, 1, 1, 2], [0], [0]>} : vector<8x8x8xf32>, vector<8x8x128xf32>, vector<8x8x128xf32> -> vector<8x8x128xf32>
    "tpu.trace_stop"() : () -> ()
    %40 = vector.shape_cast %39 : vector<8x8x128xf32> to vector<1x8x8x128xf32>
    %cst_15 = arith.constant dense<0.000000e+00> : vector<1x8x128xf32>
    %41 = vector.multi_reduction <add>, %40, %cst_15 [1] : vector<1x8x8x128xf32> to vector<1x8x128xf32>
    %42 = vector.shape_cast %41 : vector<1x8x128xf32> to vector<8x128xf32>
    %c0_16 = arith.constant 0 : index
    %c0_17 = arith.constant 0 : index
    %43 = vector.load %arg4[%c0_16, %c0_17] : memref<128x128xf32, #tpu.memory_space<vmem>>, vector<128x128xf32>
    %cst_18 = arith.constant dense<0.000000e+00> : vector<8x128xf32>
    %44 = tpu.matmul %42, %43, %cst_18 {dimension_numbers = #tpu.dot_dimension_numbers<[1], [0], [0], [1], [0, 0, 1, 1], [], []>} : vector<8x128xf32>, vector<128x128xf32>, vector<8x128xf32> -> vector<8x128xf32>
    %c0_19 = arith.constant 0 : index
    %c0_20 = arith.constant 0 : index
    %45 = vector.load %arg5[%c0_19, %c0_20] : memref<1x128xf32, #tpu.memory_space<vmem>>, vector<1x128xf32>
    %46 = vector.broadcast %45 : vector<1x128xf32> to vector<8x128xf32>
    %47 = arith.addf %44, %46 : vector<8x128xf32>
    %48 = vector.shape_cast %47 : vector<8x128xf32> to vector<1x8x128xf32>
    %c0_21 = arith.constant 0 : index
    %c0_22 = arith.constant 0 : index
    %c0_23 = arith.constant 0 : index
    %49 = vector.load %arg7[%c0_21, %c0_22, %c0_23] : memref<1x8x128xf32, #tpu.memory_space<vmem>>, vector<1x8x128xf32>
    tpu.vector_store %arg7[%c0_21, %c0_22, %c0_23], %48 {strides = array<i32>} : memref<1x8x128xf32, #tpu.memory_space<vmem>>, vector<1x8x128xf32>,
    return
  }
  func.func @transform_0(%arg0: i32) -> (i32, i32, i32) {
    %c0_i32 = arith.constant 0 : i32
    %c0_i32_0 = arith.constant 0 : i32
    %c0_i32_1 = arith.constant 0 : i32
    return %arg0, %c0_i32, %c0_i32_0 : i32, i32, i32
  }
  func.func @transform_1(%arg0: i32) -> (i32, i32) {
    %c0_i32 = arith.constant 0 : i32
    %c0_i32_0 = arith.constant 0 : i32
    %c0_i32_1 = arith.constant 0 : i32
    return %c0_i32, %c0_i32_0 : i32, i32
  }
  func.func @transform_2(%arg0: i32) -> (i32, i32) {
    %c0_i32 = arith.constant 0 : i32
    %c0_i32_0 = arith.constant 0 : i32
    %c0_i32_1 = arith.constant 0 : i32
    return %c0_i32, %c0_i32_0 : i32, i32
  }
  func.func @transform_3(%arg0: i32) -> (i32, i32) {
    %c0_i32 = arith.constant 0 : i32
    %c0_i32_0 = arith.constant 0 : i32
    %c0_i32_1 = arith.constant 0 : i32
    return %c0_i32, %c0_i32_0 : i32, i32
  }
  func.func @transform_4(%arg0: i32) -> (i32, i32) {
    %c0_i32 = arith.constant 0 : i32
    %c0_i32_0 = arith.constant 0 : i32
    %c0_i32_1 = arith.constant 0 : i32
    return %c0_i32, %c0_i32_0 : i32, i32
  }
  func.func @transform_5(%arg0: i32) -> (i32, i32, i32, i32) {
    %c0_i32 = arith.constant 0 : i32
    %c0_i32_0 = arith.constant 0 : i32
    %c0_i32_1 = arith.constant 0 : i32
    %c0_i32_2 = arith.constant 0 : i32
    %c0_i32_3 = arith.constant 0 : i32
    return %c0_i32, %c0_i32_0, %c0_i32_1, %c0_i32_2 : i32, i32, i32, i32
  }
  func.func @transform_6(%arg0: i32) -> (i32, i32, i32) {
    %c0_i32 = arith.constant 0 : i32
    %c0_i32_0 = arith.constant 0 : i32
    %c0_i32_1 = arith.constant 0 : i32
    return %arg0, %c0_i32, %c0_i32_0 : i32, i32, i32
  }
}

</mosaic_0001>

<llo_original>
// kernel: tpu_custom_call.1
$region0: #{tpu_custom_call.1}
  #allocation0 [shape = 'u32[]', space=smem, size = 0x4, offset = 0x4, fixed_abs, tag = 'smem constant byte address 0x4 - core index']
  #allocation1 [shape = 'u32[144,128]{1,0:T(1,128)}', space=vmem, size = 0x12000, scoped, tag = 'internal scratch']
  %s0 = inlined_call_operand.hbm [shape: f32[2,8,128], index: 0, kind: input, shape index: {}]
  %s1 = inlined_call_operand.hbm [shape: f32[128,384], index: 1, kind: input, shape index: {}]
  %s2 = inlined_call_operand.vmem [shape: f32[1,384], index: 2, kind: input, shape index: {}]
  %s3 = inlined_call_operand.hbm [shape: f32[128,128], index: 3, kind: input, shape index: {}]
  %s4 = inlined_call_operand.vmem [shape: f32[1,128], index: 4, kind: input, shape index: {}]
  %s5 = inlined_call_operand.vmem [shape: f32[1,8,1,128], index: 5, kind: input, shape index: {}]
  %s6 = inlined_call_operand.hbm [shape: f32[2,8,128], index: 6, kind: output, shape index: {}]
  %s7 = sld [smem:[#allocation0]]
  $region69: #{tpu_custom_call.1} parent=0
    _
  %s9 = ssub.s32 1, %s7
  %s10 = scalar_select 0, %s9, %s7
  $region1: #{tpu_custom_call.1} parent=0
    #allocation2 [shape = 'u8[8192]{0}', space=vmem, size = 0x2000, scoped, tag = 'input window, operand 0']
    #allocation3 [shape = 's32[2]{0}', space=sflag, size = 0x8, scoped, tag = 'scoped memory for tpu_custom_call.1']
    #allocation4 [shape = 's32[2]{0}', space=sflag, size = 0x8, scoped, tag = 'scoped memory for tpu_custom_call.1']
    #allocation5 [shape = 'u8[196608]{0}', space=vmem, size = 0x30000, scoped, tag = 'input window, operand 1, single buffered']
    #allocation6 [shape = 's32[1]{0}', space=sflag, size = 0x4, scoped, tag = 'scoped memory for tpu_custom_call.1']
    #allocation7 [shape = 'u8[65536]{0}', space=vmem, size = 0x10000, scoped, tag = 'input window, operand 3, single buffered']
    #allocation8 [shape = 'u8[8192]{0}', space=vmem, size = 0x2000, scoped, tag = 'output window, operand 0']
    %11 = vsyncpa [#allocation3], 0
    %s12 = scalar_lea.sflag [#allocation3], 1
    %13 = vsyncpa %s12, 0
    %14 = vsyncpa [#allocation6], 0
    %15 = vsyncpa [#allocation4], 0
    %s16 = scalar_lea.sflag [#allocation4], 1
    %17 = vsyncpa %s16, 0
    loop: start=0, step=1, limit=4
    $region2: #{tpu_custom_call.1} parent=1 // loop_pre_header
      _
    $region3: #{tpu_custom_call.1} parent=1 // loop_header
      %s19 = sphi 0, %s23
      %p20 = scmp.ge.s32.totalorder %s19, 4
      %s29 = sphi 0, %s31
      %s32 = sphi 0, %s29
      %s33 = sphi 0, %s32
      %s49 = sphi 0, %s33
      %s53 = sphi 0, %s53
      %s55 = sphi 0, %s53
      %s56 = sphi 0, %s55
      %s70 = sphi 0, %s56
      %s74 = sphi 0, %s74
      %s76 = sphi 0, %s74
      %s77 = sphi 0, %s76
      %s91 = sphi 0, %s77
      %s95 = sphi 0, %s95
      %s97 = sphi 0, %s95
      %s98 = sphi 0, %s97
      %s112 = sphi 0, %s98
      %s116 = sphi 0, %s116
      %s118 = sphi 0, %s116
      %s119 = sphi 0, %s118
      %s133 = sphi 0, %s119
      %s137 = sphi 0, %s137
      %s139 = sphi 0, %s137
      %s140 = sphi 0, %s139
      %s154 = sphi 0, %s140
      %s160 = sphi 0, %s162
      %s163 = sphi 0, %s160
      %s164 = sphi 0, %s163
      %s180 = sphi 0, %s164
    $region4: #{tpu_custom_call.1} parent=1 // loop_header_branch
      %22 = sbr.rel (%p20) target = $region8
    $region5: #{tpu_custom_call.1} parent=1 // loop_body
      %s24 = ssub.s32 %s19, 1
      %s25 = ssub.s32 %s19, 2
      %s26 = sadd.s32 %s19, 1
      %s27 = ssub.s32 %s19, %s26
      %p28 = scmp.eq.s32.totalorder %s27, 0
      %s30 = sadd.s32 %s29, 1
      %s31 = scalar_select %p28, %s29, %s30
      %p34 = pneg %p28
      %p35 = scmp.eq.s32.totalorder %s19, 1
      %p36 = por %p34, %p35
      %p37 = scmp.ne.s32.totalorder %s29, %s32
      %p38 = scmp.eq.s32.totalorder %s19, 0
      %p39 = por %p37, %p38
      %p40 = scmp.ne.s32.totalorder %s29, %s32
      %p41 = scmp.eq.s32.totalorder %s24, 1
      %p42 = por %p40, %p41
      %p43 = scmp.ne.s32.totalorder %s32, %s33
      %p44 = scmp.eq.s32.totalorder %s24, 0
      %p45 = por %p43, %p44
      %p46 = scmp.ne.s32.totalorder %s32, %s33
      %p47 = scmp.eq.s32.totalorder %s25, 1
      %p48 = por %p46, %p47
      %p50 = scmp.ne.s32.totalorder %s33, %s49
      %p51 = scmp.eq.s32.totalorder %s25, 0
      %p52 = por %p50, %p51
      %s54 = sadd.s32 %s53, 1
      %p57 = scmp.eq.s32.totalorder %s19, 1
      %p58 = scmp.ne.s32.totalorder %s53, %s55
      %p59 = scmp.eq.s32.totalorder %s19, 0
      %p60 = por %p58, %p59
      %p61 = scmp.ne.s32.totalorder %s53, %s55
      %p62 = scmp.eq.s32.totalorder %s24, 1
      %p63 = por %p61, %p62
      %p64 = scmp.ne.s32.totalorder %s55, %s56
      %p65 = scmp.eq.s32.totalorder %s24, 0
      %p66 = por %p64, %p65
      %p67 = scmp.ne.s32.totalorder %s55, %s56
      %p68 = scmp.eq.s32.totalorder %s25, 1
      %p69 = por %p67, %p68
      %p71 = scmp.ne.s32.totalorder %s56, %s70
      %p72 = scmp.eq.s32.totalorder %s25, 0
      %p73 = por %p71, %p72
      %s75 = sadd.s32 %s74, 1
      %p78 = scmp.eq.s32.totalorder %s19, 1
      %p79 = scmp.ne.s32.totalorder %s74, %s76
      %p80 = scmp.eq.s32.totalorder %s19, 0
      %p81 = por %p79, %p80
      %p82 = scmp.ne.s32.totalorder %s74, %s76
      %p83 = scmp.eq.s32.totalorder %s24, 1
      %p84 = por %p82, %p83
      %p85 = scmp.ne.s32.totalorder %s76, %s77
      %p86 = scmp.eq.s32.totalorder %s24, 0
      %p87 = por %p85, %p86
      %p88 = scmp.ne.s32.totalorder %s76, %s77
      %p89 = scmp.eq.s32.totalorder %s25, 1
      %p90 = por %p88, %p89
      %p92 = scmp.ne.s32.totalorder %s77, %s91
      %p93 = scmp.eq.s32.totalorder %s25, 0
      %p94 = por %p92, %p93
      %s96 = sadd.s32 %s95, 1
      %p99 = scmp.eq.s32.totalorder %s19, 1
      %p100 = scmp.ne.s32.totalorder %s95, %s97
      %p101 = scmp.eq.s32.totalorder %s19, 0
      %p102 = por %p100, %p101
      %p103 = scmp.ne.s32.totalorder %s95, %s97
      %p104 = scmp.eq.s32.totalorder %s24, 1
      %p105 = por %p103, %p104
      %p106 = scmp.ne.s32.totalorder %s97, %s98
      %p107 = scmp.eq.s32.totalorder %s24, 0
      %p108 = por %p106, %p107
      %p109 = scmp.ne.s32.totalorder %s97, %s98
      %p110 = scmp.eq.s32.totalorder %s25, 1
      %p111 = por %p109, %p110
      %p113 = scmp.ne.s32.totalorder %s98, %s112
      %p114 = scmp.eq.s32.totalorder %s25, 0
      %p115 = por %p113, %p114
      %s117 = sadd.s32 %s116, 1
      %p120 = scmp.eq.s32.totalorder %s19, 1
      %p121 = scmp.ne.s32.totalorder %s116, %s118
      %p122 = scmp.eq.s32.totalorder %s19, 0
      %p123 = por %p121, %p122
      %p124 = scmp.ne.s32.totalorder %s116, %s118
      %p125 = scmp.eq.s32.totalorder %s24, 1
      %p126 = por %p124, %p125
      %p127 = scmp.ne.s32.totalorder %s118, %s119
      %p128 = scmp.eq.s32.totalorder %s24, 0
      %p129 = por %p127, %p128
      %p130 = scmp.ne.s32.totalorder %s118, %s119
      %p131 = scmp.eq.s32.totalorder %s25, 1
      %p132 = por %p130, %p131
      %p134 = scmp.ne.s32.totalorder %s119, %s133
      %p135 = scmp.eq.s32.totalorder %s25, 0
      %p136 = por %p134, %p135
      %s138 = sadd.s32 %s137, 1
      %p141 = scmp.eq.s32.totalorder %s19, 1
      %p142 = scmp.ne.s32.totalorder %s137, %s139
      %p143 = scmp.eq.s32.totalorder %s19, 0
      %p144 = por %p142, %p143
      %p145 = scmp.ne.s32.totalorder %s137, %s139
      %p146 = scmp.eq.s32.totalorder %s24, 1
      %p147 = por %p145, %p146
      %p148 = scmp.ne.s32.totalorder %s139, %s140
      %p149 = scmp.eq.s32.totalorder %s24, 0
      %p150 = por %p148, %p149
      %p151 = scmp.ne.s32.totalorder %s139, %s140
      %p152 = scmp.eq.s32.totalorder %s25, 1
      %p153 = por %p151, %p152
      %p155 = scmp.ne.s32.totalorder %s140, %s154
      %p156 = scmp.eq.s32.totalorder %s25, 0
      %p157 = por %p155, %p156
      %s158 = ssub.s32 %s19, %s26
      %p159 = scmp.eq.s32.totalorder %s158, 0
      %s161 = sadd.s32 %s160, 1
      %s162 = scalar_select %p159, %s160, %s161
      %p165 = pneg %p159
      %p166 = scmp.eq.s32.totalorder %s19, 1
      %p167 = por %p165, %p166
      %p168 = scmp.ne.s32.totalorder %s160, %s163
      %p169 = scmp.eq.s32.totalorder %s19, 0
      %p170 = por %p168, %p169
      %p171 = scmp.ne.s32.totalorder %s160, %s163
      %p172 = scmp.eq.s32.totalorder %s24, 1
      %p173 = por %p171, %p172
      %p174 = scmp.ne.s32.totalorder %s163, %s164
      %p175 = scmp.eq.s32.totalorder %s24, 0
      %p176 = por %p174, %p175
      %p177 = scmp.ne.s32.totalorder %s163, %s164
      %p178 = scmp.eq.s32.totalorder %s25, 1
      %p179 = por %p177, %p178
      %p181 = scmp.ne.s32.totalorder %s164, %s180
      %p182 = scmp.eq.s32.totalorder %s25, 0
      %p183 = por %p181, %p182
      %p184 = scmp.le.s32.totalorder 1, %s19
      %p185 = scmp.lt.s32.totalorder %s19, 3
      %p186 = pnand %p184, %p185
      %p187 = pneg %p186
      // Predicated region
      $region9: #{tpu_custom_call.1} parent=5 // pred_check
        _
      $region10: #{tpu_custom_call.1} parent=5 // pred_check_branch
        %189 = sbr.rel (%p186) target = $region12
      $region11: #{tpu_custom_call.1} parent=5 // pred_region
        %s190 = ssub.s32 %s19, 1
        // Predicated region
        $region13: #{tpu_custom_call.1} parent=11 // pred_check
          %p191 = pneg %p66
        $region14: #{tpu_custom_call.1} parent=11 // pred_check_branch
          %193 = sbr.rel (%p191) target = $region16
        $region15: #{tpu_custom_call.1} parent=11 // pred_region
          %s195 = ssub.s32 6144, 6144
          %196 = vsyncadd [#allocation6], %s195
          %s197 = sshll.u32 [#allocation5], 4
          %s198 = int_to_ptr.vmem [resolvable:$true] %s197
          %203 = dma.hbm_to_vmem [thread:$0]  %s1, 6144, %s198, [#allocation6], 384, 384, 24
        $region16: #{tpu_custom_call.1} parent=11 // pred_fallthru
          _
        // Predicated region
        $region17: #{tpu_custom_call.1} parent=11 // pred_check
          %p204 = pneg %p87
        $region18: #{tpu_custom_call.1} parent=11 // pred_check_branch
          %206 = sbr.rel (%p204) target = $region20
        $region19: #{tpu_custom_call.1} parent=11 // pred_region
          _
        $region20: #{tpu_custom_call.1} parent=11 // pred_fallthru
          _
        // Predicated region
        $region21: #{tpu_custom_call.1} parent=11 // pred_check
          %p207 = pneg %p108
        $region22: #{tpu_custom_call.1} parent=11 // pred_check_branch
          %209 = sbr.rel (%p207) target = $region24
        $region23: #{tpu_custom_call.1} parent=11 // pred_region
          %s211 = ssub.s32 2048, 2048
          %212 = vsyncadd [#allocation6], %s211
          %s213 = sshll.u32 [#allocation7], 4
          %s214 = int_to_ptr.vmem [resolvable:$true] %s213
          %219 = dma.hbm_to_vmem [thread:$0]  %s3, 2048, %s214, [#allocation6], 128, 128, 8
        $region24: #{tpu_custom_call.1} parent=11 // pred_fallthru
          _
        // Predicated region
        $region25: #{tpu_custom_call.1} parent=11 // pred_check
          %p220 = pneg %p129
        $region26: #{tpu_custom_call.1} parent=11 // pred_check_branch
          %222 = sbr.rel (%p220) target = $region28
        $region27: #{tpu_custom_call.1} parent=11 // pred_region
          _
        $region28: #{tpu_custom_call.1} parent=11 // pred_fallthru
          _
        // Predicated region
        $region29: #{tpu_custom_call.1} parent=11 // pred_check
          %p223 = pneg %p150
        $region30: #{tpu_custom_call.1} parent=11 // pred_check_branch
          %225 = sbr.rel (%p223) target = $region32
        $region31: #{tpu_custom_call.1} parent=11 // pred_region
          _
        $region32: #{tpu_custom_call.1} parent=11 // pred_fallthru
          _
      $region12: #{tpu_custom_call.1} parent=5 // pred_fallthru
        _
      %p226 = scmp.lt.s32.totalorder %s19, 2
      // Predicated region
      $region33: #{tpu_custom_call.1} parent=5 // pred_check
        %p227 = pneg %p226
      $region34: #{tpu_custom_call.1} parent=5 // pred_check_branch
        %229 = sbr.rel (%p227) target = $region36
      $region35: #{tpu_custom_call.1} parent=5 // pred_region
        // Predicated region
        $region37: #{tpu_custom_call.1} parent=35 // pred_check
          %p230 = pneg %p39
        $region38: #{tpu_custom_call.1} parent=35 // pred_check_branch
          %232 = sbr.rel (%p230) target = $region40
        $region39: #{tpu_custom_call.1} parent=35 // pred_region
          %s233 = sand.u32 %s29, 1
          %s234 = scalar_lea.sflag [#allocation3], %s233
          %s235 = sand.u32 %s29, 1
          %s236 = smul.addr %s235, 8
          %s237 = scalar_lea.vmem [#allocation2], %s236
          %s239 = ssub.s32 128, 128
          %240 = vsyncadd %s234, %s239
          %s241 = smul.addr %s19, 128
          %s242 = scalar_lea.hbm %s0, %s241
          %s244 = sshll.u32 %s237, 4
          %s245 = int_to_ptr.vmem [resolvable:$true] %s244
          %247 = dma.hbm_to_vmem [thread:$0]  %s242, 128, %s245, %s234
        $region40: #{tpu_custom_call.1} parent=35 // pred_fallthru
          _
      $region36: #{tpu_custom_call.1} parent=5 // pred_fallthru
        _
      %p248 = scmp.le.s32.totalorder 1, %s19
      %p249 = scmp.lt.s32.totalorder %s19, 3
      %p250 = pnand %p248, %p249
      %p251 = pneg %p250
      // Predicated region
      $region41: #{tpu_custom_call.1} parent=5 // pred_check
        _
      $region42: #{tpu_custom_call.1} parent=5 // pred_check_branch
        %253 = sbr.rel (%p250) target = $region44
      $region43: #{tpu_custom_call.1} parent=5 // pred_region
        %s254 = ssub.s32 %s19, 1
        %s255 = sand.u32 %s32, 1
        %s256 = scalar_lea.sflag [#allocation3], %s255
        %s257 = sand.u32 %s32, 1
        %s258 = smul.addr %s257, 8
        %s259 = scalar_lea.vmem [#allocation2], %s258
        // Predicated region
        $region45: #{tpu_custom_call.1} parent=43 // pred_check
          %p260 = pneg %p45
        $region46: #{tpu_custom_call.1} parent=43 // pred_check_branch
          %262 = sbr.rel (%p260) target = $region48
        $region47: #{tpu_custom_call.1} parent=43 // pred_region
          %263 = dma.done %s256, 128
        $region48: #{tpu_custom_call.1} parent=43 // pred_fallthru
          _
        // Predicated region
        $region49: #{tpu_custom_call.1} parent=43 // pred_check
          %p264 = pneg %p66
        $region50: #{tpu_custom_call.1} parent=43 // pred_check_branch
          %266 = sbr.rel (%p264) target = $region52
        $region51: #{tpu_custom_call.1} parent=43 // pred_region
          %267 = dma.done [#allocation6], 6144
        $region52: #{tpu_custom_call.1} parent=43 // pred_fallthru
          _
        // Predicated region
        $region53: #{tpu_custom_call.1} parent=43 // pred_check
          %p268 = pneg %p108
        $region54: #{tpu_custom_call.1} parent=43 // pred_check_branch
          %270 = sbr.rel (%p268) target = $region56
        $region55: #{tpu_custom_call.1} parent=43 // pred_region
          %271 = dma.done [#allocation6], 2048
        $region56: #{tpu_custom_call.1} parent=43 // pred_fallthru
          _
        %s272 = sand.u32 %s32, 1
        %s273 = scalar_lea.sflag [#allocation3], %s272
        %s274 = sand.u32 %s32, 1
        %s275 = smul.addr %s274, 8
        %s276 = scalar_lea.vmem [#allocation2], %s275
        %p277 = pneg %p45
        %p278 = pneg %p42
        %p279 = pneg %p66
        %p280 = pneg %p63
        %p281 = pneg %p87
        %p282 = pneg %p84
        %p283 = pneg %p108
        %p284 = pneg %p105
        %p285 = pneg %p129
        %p286 = pneg %p126
        %p287 = pneg %p150
        %p288 = pneg %p147
        %p289 = pneg %p176
        %p290 = pneg %p173
        %s291 = sand.u32 %s163, 1
        %s292 = scalar_lea.sflag [#allocation4], %s291
        %s293 = sand.u32 %s163, 1
        %s294 = smul.addr %s293, 8
        %s295 = scalar_lea.vmem [#allocation8], %s294
        %v296 = vld [vmem:[%s259] sm:$0xff]
        %v297 = vld [vmem:[#allocation5] sm:$0xff]
        %v298 = vld [vmem:[#allocation5 + $0x8] sm:$0xff]
        %v299 = vld [vmem:[#allocation5 + $0x10] sm:$0xff]
        %v300 = vld [vmem:[#allocation5 + $0x18] sm:$0xff]
        %v301 = vld [vmem:[#allocation5 + $0x20] sm:$0xff]
        %v302 = vld [vmem:[#allocation5 + $0x28] sm:$0xff]
        %v303 = vld [vmem:[#allocation5 + $0x30] sm:$0xff]
        %v304 = vld [vmem:[#allocation5 + $0x38] sm:$0xff]
        %v305 = vld [vmem:[#allocation5 + $0x40] sm:$0xff]
        %v306 = vld [vmem:[#allocation5 + $0x48] sm:$0xff]
        %v307 = vld [vmem:[#allocation5 + $0x50] sm:$0xff]
        %v308 = vld [vmem:[#allocation5 + $0x58] sm:$0xff]
        %v309 = vld [vmem:[#allocation5 + $0x60] sm:$0xff]
        %v310 = vld [vmem:[#allocation5 + $0x68] sm:$0xff]
        %v311 = vld [vmem:[#allocation5 + $0x70] sm:$0xff]
        %v312 = vld [vmem:[#allocation5 + $0x78] sm:$0xff]
        %v313 = vld [vmem:[#allocation5 + $0x80] sm:$0xff]
        %v314 = vld [vmem:[#allocation5 + $0x88] sm:$0xff]
        %v315 = vld [vmem:[#allocation5 + $0x90] sm:$0xff]
        %v316 = vld [vmem:[#allocation5 + $0x98] sm:$0xff]
        %v317 = vld [vmem:[#allocation5 + $0xa0] sm:$0xff]
        %v318 = vld [vmem:[#allocation5 + $0xa8] sm:$0xff]
        %v319 = vld [vmem:[#allocation5 + $0xb0] sm:$0xff]
        %v320 = vld [vmem:[#allocation5 + $0xb8] sm:$0xff]
        %v321 = vld [vmem:[#allocation5 + $0xc0] sm:$0xff]
        %v322 = vld [vmem:[#allocation5 + $0xc8] sm:$0xff]
        %v323 = vld [vmem:[#allocation5 + $0xd0] sm:$0xff]
        %v324 = vld [vmem:[#allocation5 + $0xd8] sm:$0xff]
        %v325 = vld [vmem:[#allocation5 + $0xe0] sm:$0xff]
        %v326 = vld [vmem:[#allocation5 + $0xe8] sm:$0xff]
        %v327 = vld [vmem:[#allocation5 + $0xf0] sm:$0xff]
        %v328 = vld [vmem:[#allocation5 + $0xf8] sm:$0xff]
        %v329 = vld [vmem:[#allocation5 + $0x100] sm:$0xff]
        %v330 = vld [vmem:[#allocation5 + $0x108] sm:$0xff]
        %v331 = vld [vmem:[#allocation5 + $0x110] sm:$0xff]
        %v332 = vld [vmem:[#allocation5 + $0x118] sm:$0xff]
        %v333 = vld [vmem:[#allocation5 + $0x120] sm:$0xff]
        %v334 = vld [vmem:[#allocation5 + $0x128] sm:$0xff]
        %v335 = vld [vmem:[#allocation5 + $0x130] sm:$0xff]
        %v336 = vld [vmem:[#allocation5 + $0x138] sm:$0xff]
        %v337 = vld [vmem:[#allocation5 + $0x140] sm:$0xff]
        %v338 = vld [vmem:[#allocation5 + $0x148] sm:$0xff]
        %v339 = vld [vmem:[#allocation5 + $0x150] sm:$0xff]
        %v340 = vld [vmem:[#allocation5 + $0x158] sm:$0xff]
        %v341 = vld [vmem:[#allocation5 + $0x160] sm:$0xff]
        %v342 = vld [vmem:[#allocation5 + $0x168] sm:$0xff]
        %v343 = vld [vmem:[#allocation5 + $0x170] sm:$0xff]
        %v344 = vld [vmem:[#allocation5 + $0x178] sm:$0xff]
        %v345 = vld [vmem:[%s2] sm:$0x7]
        %v347 = vlaneseq
        %v348 = vshrl.u32 %v347, 7
        %v349 = vsub.s32 0, %v348
        %v350 = vrot.slane %v345, %v349
        %v351 = vlaneseq
        %v352 = vshrl.u32 %v351, 7
        %v353 = vsub.s32 1, %v352
        %v354 = vrot.slane %v345, %v353
        %v355 = vlaneseq
        %v356 = vshrl.u32 %v355, 7
        %v357 = vsub.s32 2, %v356
        %v358 = vrot.slane %v345, %v357
        %362 = vmatprep.subr.mxu0 %v298
        %363 = vmatpush1.msra.mxu0 %v297
        %364 = vmatprep.subr.mxu0 %v301
        %365 = vmatpush1.msra.mxu0 %v300
        %366 = vmatprep.subr.mxu0 %v304
        %367 = vmatpush1.msra.mxu0 %v303
        %368 = vmatprep.subr.mxu0 %v307
        %369 = vmatpush1.msra.mxu0 %v306
        %370 = vmatprep.subr.mxu0 %v310
        %371 = vmatpush1.msra.mxu0 %v309
        %372 = vmatprep.subr.mxu0 %v313
        %373 = vmatpush1.msra.mxu0 %v312
        %374 = vmatprep.subr.mxu0 %v316
        %375 = vmatpush1.msra.mxu0 %v315
        %376 = vmatprep.subr.mxu0 %v319
        %377 = vmatpush1.msra.mxu0 %v318
        %378 = vmatprep.subr.mxu0 %v322
        %379 = vmatpush1.msra.mxu0 %v321
        %380 = vmatprep.subr.mxu0 %v325
        %381 = vmatpush1.msra.mxu0 %v324
        %382 = vmatprep.subr.mxu0 %v328
        %383 = vmatpush1.msra.mxu0 %v327
        %384 = vmatprep.subr.mxu0 %v331
        %385 = vmatpush1.msra.mxu0 %v330
        %386 = vmatprep.subr.mxu0 %v334
        %387 = vmatpush1.msra.mxu0 %v333
        %388 = vmatprep.subr.mxu0 %v337
        %389 = vmatpush1.msra.mxu0 %v336
        %390 = vmatprep.subr.mxu0 %v340
        %391 = vmatpush1.msra.mxu0 %v339
        %392 = vmatprep.subr.mxu0 %v343
        %393 = vmatpush1.msra.mxu0 %v342
        %394 = vmatprep.subr.mxu0 0.0
        %395 = vmatpush1.msra.mxu0 0.0
        %396 = vmatprep.subr.mxu0 0.0
        %397 = vmatpush1.msra.mxu0 0.0
        %398 = vmatprep.subr.mxu0 0.0
        %399 = vmatpush1.msra.mxu0 0.0
        %400 = vmatprep.subr.mxu0 0.0
        %401 = vmatpush1.msra.mxu0 0.0
        %402 = vmatprep.subr.mxu0 0.0
        %403 = vmatpush1.msra.mxu0 0.0
        %404 = vmatprep.subr.mxu0 0.0
        %405 = vmatpush1.msra.mxu0 0.0
        %406 = vmatprep.subr.mxu0 0.0
        %407 = vmatpush1.msra.mxu0 0.0
        %408 = vmatprep.subr.mxu0 0.0
        %409 = vmatpush1.msra.mxu0 0.0
        %410 = vmatprep.subr.mxu0 0.0
        %411 = vmatpush1.msra.mxu0 0.0
        %412 = vmatprep.subr.mxu0 0.0
        %413 = vmatpush1.msra.mxu0 0.0
        %414 = vmatprep.subr.mxu0 0.0
        %415 = vmatpush1.msra.mxu0 0.0
        %416 = vmatprep.subr.mxu0 0.0
        %417 = vmatpush1.msra.mxu0 0.0
        %418 = vmatprep.subr.mxu0 0.0
        %419 = vmatpush1.msra.mxu0 0.0
        %420 = vmatprep.subr.mxu0 0.0
        %421 = vmatpush1.msra.mxu0 0.0
        %422 = vmatprep.subr.mxu0 0.0
        %423 = vmatpush1.msra.mxu0 0.0
        %424 = vmatprep.subr.mxu0 0.0
        %425 = vmatpush1.msra.mxu0 0.0
        %426 = vmatprep.mubr.f32.mxu0 0.0
        %427 = vmatmul.mubr.f32.gmra.mrb[0].mxu0 %v296
        %v428 = vpop.f32.mrb[0].mxu0
        %v429 = vadd.f32 %v350, %v428
        %v430 = vpop.f32.mrb[0].mxu0
        %v431 = vadd.f32 %v354, %v430
        %432 = vdwg.mxu0
        %433 = vmatprep.subr.mxu0 0.0
        %434 = vmatpush1.msra.mxu0 %v299
        %435 = vmatprep.subr.mxu0 0.0
        %436 = vmatpush1.msra.mxu0 %v302
        %437 = vmatprep.subr.mxu0 0.0
        %438 = vmatpush1.msra.mxu0 %v305
        %439 = vmatprep.subr.mxu0 0.0
        %440 = vmatpush1.msra.mxu0 %v308
        %441 = vmatprep.subr.mxu0 0.0
        %442 = vmatpush1.msra.mxu0 %v311
        %443 = vmatprep.subr.mxu0 0.0
        %444 = vmatpush1.msra.mxu0 %v314
        %445 = vmatprep.subr.mxu0 0.0
        %446 = vmatpush1.msra.mxu0 %v317
        %447 = vmatprep.subr.mxu0 0.0
        %448 = vmatpush1.msra.mxu0 %v320
        %449 = vmatprep.subr.mxu0 0.0
        %450 = vmatpush1.msra.mxu0 %v323
        %451 = vmatprep.subr.mxu0 0.0
        %452 = vmatpush1.msra.mxu0 %v326
        %453 = vmatprep.subr.mxu0 0.0
        %454 = vmatpush1.msra.mxu0 %v329
        %455 = vmatprep.subr.mxu0 0.0
        %456 = vmatpush1.msra.mxu0 %v332
        %457 = vmatprep.subr.mxu0 0.0
        %458 = vmatpush1.msra.mxu0 %v335
        %459 = vmatprep.subr.mxu0 0.0
        %460 = vmatpush1.msra.mxu0 %v338
        %461 = vmatprep.subr.mxu0 0.0
        %462 = vmatpush1.msra.mxu0 %v341
        %463 = vmatprep.subr.mxu0 0.0
        %464 = vmatpush1.msra.mxu0 %v344
        %465 = vmatprep.subr.mxu0 0.0
        %466 = vmatpush1.msra.mxu0 0.0
        %467 = vmatprep.subr.mxu0 0.0
        %468 = vmatpush1.msra.mxu0 0.0
        %469 = vmatprep.subr.mxu0 0.0
        %470 = vmatpush1.msra.mxu0 0.0
        %471 = vmatprep.subr.mxu0 0.0
        %472 = vmatpush1.msra.mxu0 0.0
        %473 = vmatprep.subr.mxu0 0.0
        %474 = vmatpush1.msra.mxu0 0.0
        %475 = vmatprep.subr.mxu0 0.0
        %476 = vmatpush1.msra.mxu0 0.0
        %477 = vmatprep.subr.mxu0 0.0
        %478 = vmatpush1.msra.mxu0 0.0
        %479 = vmatprep.subr.mxu0 0.0
        %480 = vmatpush1.msra.mxu0 0.0
        %481 = vmatprep.subr.mxu0 0.0
        %482 = vmatpush1.msra.mxu0 0.0
        %483 = vmatprep.subr.mxu0 0.0
        %484 = vmatpush1.msra.mxu0 0.0
        %485 = vmatprep.subr.mxu0 0.0
        %486 = vmatpush1.msra.mxu0 0.0
        %487 = vmatprep.subr.mxu0 0.0
        %488 = vmatpush1.msra.mxu0 0.0
        %489 = vmatprep.subr.mxu0 0.0
        %490 = vmatpush1.msra.mxu0 0.0
        %491 = vmatprep.subr.mxu0 0.0
        %492 = vmatpush1.msra.mxu0 0.0
        %493 = vmatprep.subr.mxu0 0.0
        %494 = vmatpush1.msra.mxu0 0.0
        %495 = vmatprep.subr.mxu0 0.0
        %496 = vmatpush1.msra.mxu0 0.0
        %497 = vmatprep.mubr.f32.mxu0 0.0
        %498 = vmatmul.mubr.f32.gmra.mrb[0].mxu0 %v296
        %v499 = vpop.f32.mrb[0].mxu0
        %v500 = vadd.f32 %v358, %v499
        %v501 = vpop.f32.mrb[0].mxu0
        %502 = vdwg.mxu0
        %v503 = vld [vmem:[%s5] sm:$0x1]
        %v504 = vld [vmem:[%s5 + $0x1] sm:$0x1]
        %v505 = vld [vmem:[%s5 + $0x2] sm:$0x1]
        %v506 = vld [vmem:[%s5 + $0x3] sm:$0x1]
        %v507 = vld [vmem:[%s5 + $0x4] sm:$0x1]
        %v508 = vld [vmem:[%s5 + $0x5] sm:$0x1]
        %v509 = vld [vmem:[%s5 + $0x6] sm:$0x1]
        %v510 = vld [vmem:[%s5 + $0x7] sm:$0x1]
        %v519 = vlaneseq
        %v520 = vshrl.u32 %v519, 7
        %v521 = vsub.s32 0, %v520
        %v522 = vrot.slane %v503, %v521
        %v523 = vlaneseq
        %v524 = vshrl.u32 %v523, 7
        %v525 = vsub.s32 0, %v524
        %v526 = vrot.slane %v504, %v525
        %v527 = vlaneseq
        %v528 = vshrl.u32 %v527, 7
        %v529 = vsub.s32 0, %v528
        %v530 = vrot.slane %v505, %v529
        %v531 = vlaneseq
        %v532 = vshrl.u32 %v531, 7
        %v533 = vsub.s32 0, %v532
        %v534 = vrot.slane %v506, %v533
        %v535 = vlaneseq
        %v536 = vshrl.u32 %v535, 7
        %v537 = vsub.s32 0, %v536
        %v538 = vrot.slane %v507, %v537
        %v539 = vlaneseq
        %v540 = vshrl.u32 %v539, 7
        %v541 = vsub.s32 0, %v540
        %v542 = vrot.slane %v508, %v541
        %v543 = vlaneseq
        %v544 = vshrl.u32 %v543, 7
        %v545 = vsub.s32 0, %v544
        %v546 = vrot.slane %v509, %v545
        %v547 = vlaneseq
        %v548 = vshrl.u32 %v547, 7
        %v549 = vsub.s32 0, %v548
        %v550 = vrot.slane %v510, %v549
        %v559 = vmul.f32 %v429, %v522
        %v560 = vmul.f32 %v429, %v526
        %v561 = vmul.f32 %v429, %v530
        %v562 = vmul.f32 %v429, %v534
        %v563 = vmul.f32 %v429, %v538
        %v564 = vmul.f32 %v429, %v542
        %v565 = vmul.f32 %v429, %v546
        %v566 = vmul.f32 %v429, %v550
        %v567 = vmul.f32 %v431, %v522
        %v568 = vmul.f32 %v431, %v526
        %v569 = vmul.f32 %v431, %v530
        %v570 = vmul.f32 %v431, %v534
        %v571 = vmul.f32 %v431, %v538
        %v572 = vmul.f32 %v431, %v542
        %v573 = vmul.f32 %v431, %v546
        %v574 = vmul.f32 %v431, %v550
        %v575 = vmul.f32 %v500, %v522
        %v576 = vmul.f32 %v500, %v526
        %v577 = vmul.f32 %v500, %v530
        %v578 = vmul.f32 %v500, %v534
        %v579 = vmul.f32 %v500, %v538
        %v580 = vmul.f32 %v500, %v542
        %v581 = vmul.f32 %v500, %v546
        %v582 = vmul.f32 %v500, %v550
        %583 = vmatprep.subr.mxu0 0.0
        %584 = vmatpush1.xpose.msra.mxu0 %v567
        %585 = vmatprep.subr.mxu0 0.0
        %586 = vmatpush1.xpose.msra.mxu0 0.0
        %587 = vmatprep.subr.mxu0 0.0
        %588 = vmatpush1.xpose.msra.mxu0 0.0
        %589 = vmatprep.subr.mxu0 0.0
        %590 = vmatpush1.xpose.msra.mxu0 0.0
        %591 = vmatprep.subr.mxu0 0.0
        %592 = vmatpush1.xpose.msra.mxu0 0.0
        %593 = vmatprep.subr.mxu0 0.0
        %594 = vmatpush1.xpose.msra.mxu0 0.0
        %595 = vmatprep.subr.mxu0 0.0
        %596 = vmatpush1.xpose.msra.mxu0 0.0
        %597 = vmatprep.subr.mxu0 0.0
        %598 = vmatpush1.xpose.msra.mxu0 0.0
        %599 = vmatprep.subr.mxu0 0.0
        %600 = vmatpush1.xpose.msra.mxu0 0.0
        %601 = vmatprep.subr.mxu0 0.0
        %602 = vmatpush1.xpose.msra.mxu0 0.0
        %603 = vmatprep.subr.mxu0 0.0
        %604 = vmatpush1.xpose.msra.mxu0 0.0
        %605 = vmatprep.subr.mxu0 0.0
        %606 = vmatpush1.xpose.msra.mxu0 0.0
        %607 = vmatprep.subr.mxu0 0.0
        %608 = vmatpush1.xpose.msra.mxu0 0.0
        %609 = vmatprep.subr.mxu0 0.0
        %610 = vmatpush1.xpose.msra.mxu0 0.0
        %611 = vmatprep.subr.mxu0 0.0
        %612 = vmatpush1.xpose.msra.mxu0 0.0
        %613 = vmatprep.subr.mxu0 0.0
        %614 = vmatpush1.xpose.msra.mxu0 0.0
        %615 = vmatprep.subr.mxu0 0.0
        %616 = vmatpush1.xpose.msra.mxu0 0.0
        %617 = vmatprep.subr.mxu0 0.0
        %618 = vmatpush1.xpose.msra.mxu0 0.0
        %619 = vmatprep.subr.mxu0 0.0
        %620 = vmatpush1.xpose.msra.mxu0 0.0
        %621 = vmatprep.subr.mxu0 0.0
        %622 = vmatpush1.xpose.msra.mxu0 0.0
        %623 = vmatprep.subr.mxu0 0.0
        %624 = vmatpush1.xpose.msra.mxu0 0.0
        %625 = vmatprep.subr.mxu0 0.0
        %626 = vmatpush1.xpose.msra.mxu0 0.0
        %627 = vmatprep.subr.mxu0 0.0
        %628 = vmatpush1.xpose.msra.mxu0 0.0
        %629 = vmatprep.subr.mxu0 0.0
        %630 = vmatpush1.xpose.msra.mxu0 0.0
        %631 = vmatprep.subr.mxu0 0.0
        %632 = vmatpush1.xpose.msra.mxu0 0.0
        %633 = vmatprep.subr.mxu0 0.0
        %634 = vmatpush1.xpose.msra.mxu0 0.0
        %635 = vmatprep.subr.mxu0 0.0
        %636 = vmatpush1.xpose.msra.mxu0 0.0
        %637 = vmatprep.subr.mxu0 0.0
        %638 = vmatpush1.xpose.msra.mxu0 0.0
        %639 = vmatprep.subr.mxu0 0.0
        %640 = vmatpush1.xpose.msra.mxu0 0.0
        %641 = vmatprep.subr.mxu0 0.0
        %642 = vmatpush1.xpose.msra.mxu0 0.0
        %643 = vmatprep.subr.mxu0 0.0
        %644 = vmatpush1.xpose.msra.mxu0 0.0
        %645 = vmatprep.subr.mxu0 0.0
        %646 = vmatpush1.xpose.msra.mxu0 0.0
        %647 = vmatprep.mubr.f32.mxu0 0.0
        %648 = vmatmul.mubr.f32.gmra.mrb[0].mxu0 %v559
        %v649 = vpop.f32.mrb[0].mxu0
        %v650 = vadd.f32 0.0, %v649
        %v651 = vpop.f32.mrb[0].mxu0
        %652 = vdwg.mxu0
        %653 = vmatprep.subr.mxu0 0.0
        %654 = vmatpush1.xpose.msra.mxu0 %v568
        %655 = vmatprep.subr.mxu0 0.0
        %656 = vmatpush1.xpose.msra.mxu0 0.0
        %657 = vmatprep.subr.mxu0 0.0
        %658 = vmatpush1.xpose.msra.mxu0 0.0
        %659 = vmatprep.subr.mxu0 0.0
        %660 = vmatpush1.xpose.msra.mxu0 0.0
        %661 = vmatprep.subr.mxu0 0.0
        %662 = vmatpush1.xpose.msra.mxu0 0.0
        %663 = vmatprep.subr.mxu0 0.0
        %664 = vmatpush1.xpose.msra.mxu0 0.0
        %665 = vmatprep.subr.mxu0 0.0
        %666 = vmatpush1.xpose.msra.mxu0 0.0
        %667 = vmatprep.subr.mxu0 0.0
        %668 = vmatpush1.xpose.msra.mxu0 0.0
        %669 = vmatprep.subr.mxu0 0.0
        %670 = vmatpush1.xpose.msra.mxu0 0.0
        %671 = vmatprep.subr.mxu0 0.0
        %672 = vmatpush1.xpose.msra.mxu0 0.0
        %673 = vmatprep.subr.mxu0 0.0
        %674 = vmatpush1.xpose.msra.mxu0 0.0
        %675 = vmatprep.subr.mxu0 0.0
        %676 = vmatpush1.xpose.msra.mxu0 0.0
        %677 = vmatprep.subr.mxu0 0.0
        %678 = vmatpush1.xpose.msra.mxu0 0.0
        %679 = vmatprep.subr.mxu0 0.0
        %680 = vmatpush1.xpose.msra.mxu0 0.0
        %681 = vmatprep.subr.mxu0 0.0
        %682 = vmatpush1.xpose.msra.mxu0 0.0
        %683 = vmatprep.subr.mxu0 0.0
        %684 = vmatpush1.xpose.msra.mxu0 0.0
        %685 = vmatprep.subr.mxu0 0.0
        %686 = vmatpush1.xpose.msra.mxu0 0.0
        %687 = vmatprep.subr.mxu0 0.0
        %688 = vmatpush1.xpose.msra.mxu0 0.0
        %689 = vmatprep.subr.mxu0 0.0
        %690 = vmatpush1.xpose.msra.mxu0 0.0
        %691 = vmatprep.subr.mxu0 0.0
        %692 = vmatpush1.xpose.msra.mxu0 0.0
        %693 = vmatprep.subr.mxu0 0.0
        %694 = vmatpush1.xpose.msra.mxu0 0.0
        %695 = vmatprep.subr.mxu0 0.0
        %696 = vmatpush1.xpose.msra.mxu0 0.0
        %697 = vmatprep.subr.mxu0 0.0
        %698 = vmatpush1.xpose.msra.mxu0 0.0
        %699 = vmatprep.subr.mxu0 0.0
        %700 = vmatpush1.xpose.msra.mxu0 0.0
        %701 = vmatprep.subr.mxu0 0.0
        %702 = vmatpush1.xpose.msra.mxu0 0.0
        %703 = vmatprep.subr.mxu0 0.0
        %704 = vmatpush1.xpose.msra.mxu0 0.0
        %705 = vmatprep.subr.mxu0 0.0
        %706 = vmatpush1.xpose.msra.mxu0 0.0
        %707 = vmatprep.subr.mxu0 0.0
        %708 = vmatpush1.xpose.msra.mxu0 0.0
        %709 = vmatprep.subr.mxu0 0.0
        %710 = vmatpush1.xpose.msra.mxu0 0.0
        %711 = vmatprep.subr.mxu0 0.0
        %712 = vmatpush1.xpose.msra.mxu0 0.0
        %713 = vmatprep.subr.mxu0 0.0
        %714 = vmatpush1.xpose.msra.mxu0 0.0
        %715 = vmatprep.subr.mxu0 0.0
        %716 = vmatpush1.xpose.msra.mxu0 0.0
        %717 = vmatprep.mubr.f32.mxu0 0.0
        %718 = vmatmul.mubr.f32.gmra.mrb[0].mxu0 %v560
        %v719 = vpop.f32.mrb[0].mxu0
        %v720 = vadd.f32 0.0, %v719
        %v721 = vpop.f32.mrb[0].mxu0
        %722 = vdwg.mxu0
        %723 = vmatprep.subr.mxu0 0.0
        %724 = vmatpush1.xpose.msra.mxu0 %v569
        %725 = vmatprep.subr.mxu0 0.0
        %726 = vmatpush1.xpose.msra.mxu0 0.0
        %727 = vmatprep.subr.mxu0 0.0
        %728 = vmatpush1.xpose.msra.mxu0 0.0
        %729 = vmatprep.subr.mxu0 0.0
        %730 = vmatpush1.xpose.msra.mxu0 0.0
        %731 = vmatprep.subr.mxu0 0.0
        %732 = vmatpush1.xpose.msra.mxu0 0.0
        %733 = vmatprep.subr.mxu0 0.0
        %734 = vmatpush1.xpose.msra.mxu0 0.0
        %735 = vmatprep.subr.mxu0 0.0
        %736 = vmatpush1.xpose.msra.mxu0 0.0
        %737 = vmatprep.subr.mxu0 0.0
        %738 = vmatpush1.xpose.msra.mxu0 0.0
        %739 = vmatprep.subr.mxu0 0.0
        %740 = vmatpush1.xpose.msra.mxu0 0.0
        %741 = vmatprep.subr.mxu0 0.0
        %742 = vmatpush1.xpose.msra.mxu0 0.0
        %743 = vmatprep.subr.mxu0 0.0
        %744 = vmatpush1.xpose.msra.mxu0 0.0
        %745 = vmatprep.subr.mxu0 0.0
        %746 = vmatpush1.xpose.msra.mxu0 0.0
        %747 = vmatprep.subr.mxu0 0.0
        %748 = vmatpush1.xpose.msra.mxu0 0.0
        %749 = vmatprep.subr.mxu0 0.0
        %750 = vmatpush1.xpose.msra.mxu0 0.0
        %751 = vmatprep.subr.mxu0 0.0
        %752 = vmatpush1.xpose.msra.mxu0 0.0
        %753 = vmatprep.subr.mxu0 0.0
        %754 = vmatpush1.xpose.msra.mxu0 0.0
        %755 = vmatprep.subr.mxu0 0.0
        %756 = vmatpush1.xpose.msra.mxu0 0.0
        %757 = vmatprep.subr.mxu0 0.0
        %758 = vmatpush1.xpose.msra.mxu0 0.0
        %759 = vmatprep.subr.mxu0 0.0
        %760 = vmatpush1.xpose.msra.mxu0 0.0
        %761 = vmatprep.subr.mxu0 0.0
        %762 = vmatpush1.xpose.msra.mxu0 0.0
        %763 = vmatprep.subr.mxu0 0.0
        %764 = vmatpush1.xpose.msra.mxu0 0.0
        %765 = vmatprep.subr.mxu0 0.0
        %766 = vmatpush1.xpose.msra.mxu0 0.0
        %767 = vmatprep.subr.mxu0 0.0
        %768 = vmatpush1.xpose.msra.mxu0 0.0
        %769 = vmatprep.subr.mxu0 0.0
        %770 = vmatpush1.xpose.msra.mxu0 0.0
        %771 = vmatprep.subr.mxu0 0.0
        %772 = vmatpush1.xpose.msra.mxu0 0.0
        %773 = vmatprep.subr.mxu0 0.0
        %774 = vmatpush1.xpose.msra.mxu0 0.0
        %775 = vmatprep.subr.mxu0 0.0
        %776 = vmatpush1.xpose.msra.mxu0 0.0
        %777 = vmatprep.subr.mxu0 0.0
        %778 = vmatpush1.xpose.msra.mxu0 0.0
        %779 = vmatprep.subr.mxu0 0.0
        %780 = vmatpush1.xpose.msra.mxu0 0.0
        %781 = vmatprep.subr.mxu0 0.0
        %782 = vmatpush1.xpose.msra.mxu0 0.0
        %783 = vmatprep.subr.mxu0 0.0
        %784 = vmatpush1.xpose.msra.mxu0 0.0
        %785 = vmatprep.subr.mxu0 0.0
        %786 = vmatpush1.xpose.msra.mxu0 0.0
        %787 = vmatprep.mubr.f32.mxu0 0.0
        %788 = vmatmul.mubr.f32.gmra.mrb[0].mxu0 %v561
        %v789 = vpop.f32.mrb[0].mxu0
        %v790 = vadd.f32 0.0, %v789
        %v791 = vpop.f32.mrb[0].mxu0
        %792 = vdwg.mxu0
        %793 = vmatprep.subr.mxu0 0.0
        %794 = vmatpush1.xpose.msra.mxu0 %v570
        %795 = vmatprep.subr.mxu0 0.0
        %796 = vmatpush1.xpose.msra.mxu0 0.0
        %797 = vmatprep.subr.mxu0 0.0
        %798 = vmatpush1.xpose.msra.mxu0 0.0
        %799 = vmatprep.subr.mxu0 0.0
        %800 = vmatpush1.xpose.msra.mxu0 0.0
        %801 = vmatprep.subr.mxu0 0.0
        %802 = vmatpush1.xpose.msra.mxu0 0.0
        %803 = vmatprep.subr.mxu0 0.0
        %804 = vmatpush1.xpose.msra.mxu0 0.0
        %805 = vmatprep.subr.mxu0 0.0
        %806 = vmatpush1.xpose.msra.mxu0 0.0
        %807 = vmatprep.subr.mxu0 0.0
        %808 = vmatpush1.xpose.msra.mxu0 0.0
        %809 = vmatprep.subr.mxu0 0.0
        %810 = vmatpush1.xpose.msra.mxu0 0.0
        %811 = vmatprep.subr.mxu0 0.0
        %812 = vmatpush1.xpose.msra.mxu0 0.0
        %813 = vmatprep.subr.mxu0 0.0
        %814 = vmatpush1.xpose.msra.mxu0 0.0
        %815 = vmatprep.subr.mxu0 0.0
        %816 = vmatpush1.xpose.msra.mxu0 0.0
        %817 = vmatprep.subr.mxu0 0.0
        %818 = vmatpush1.xpose.msra.mxu0 0.0
        %819 = vmatprep.subr.mxu0 0.0
        %820 = vmatpush1.xpose.msra.mxu0 0.0
        %821 = vmatprep.subr.mxu0 0.0
        %822 = vmatpush1.xpose.msra.mxu0 0.0
        %823 = vmatprep.subr.mxu0 0.0
        %824 = vmatpush1.xpose.msra.mxu0 0.0
        %825 = vmatprep.subr.mxu0 0.0
        %826 = vmatpush1.xpose.msra.mxu0 0.0
        %827 = vmatprep.subr.mxu0 0.0
        %828 = vmatpush1.xpose.msra.mxu0 0.0
        %829 = vmatprep.subr.mxu0 0.0
        %830 = vmatpush1.xpose.msra.mxu0 0.0
        %831 = vmatprep.subr.mxu0 0.0
        %832 = vmatpush1.xpose.msra.mxu0 0.0
        %833 = vmatprep.subr.mxu0 0.0
        %834 = vmatpush1.xpose.msra.mxu0 0.0
        %835 = vmatprep.subr.mxu0 0.0
        %836 = vmatpush1.xpose.msra.mxu0 0.0
        %837 = vmatprep.subr.mxu0 0.0
        %838 = vmatpush1.xpose.msra.mxu0 0.0
        %839 = vmatprep.subr.mxu0 0.0
        %840 = vmatpush1.xpose.msra.mxu0 0.0
        %841 = vmatprep.subr.mxu0 0.0
        %842 = vmatpush1.xpose.msra.mxu0 0.0
        %843 = vmatprep.subr.mxu0 0.0
        %844 = vmatpush1.xpose.msra.mxu0 0.0
        %845 = vmatprep.subr.mxu0 0.0
        %846 = vmatpush1.xpose.msra.mxu0 0.0
        %847 = vmatprep.subr.mxu0 0.0
        %848 = vmatpush1.xpose.msra.mxu0 0.0
        %849 = vmatprep.subr.mxu0 0.0
        %850 = vmatpush1.xpose.msra.mxu0 0.0
        %851 = vmatprep.subr.mxu0 0.0
        %852 = vmatpush1.xpose.msra.mxu0 0.0
        %853 = vmatprep.subr.mxu0 0.0
        %854 = vmatpush1.xpose.msra.mxu0 0.0
        %855 = vmatprep.subr.mxu0 0.0
        %856 = vmatpush1.xpose.msra.mxu0 0.0
        %857 = vmatprep.mubr.f32.mxu0 0.0
        %858 = vmatmul.mubr.f32.gmra.mrb[0].mxu0 %v562
        %v859 = vpop.f32.mrb[0].mxu0
        %v860 = vadd.f32 0.0, %v859
        %v861 = vpop.f32.mrb[0].mxu0
        %862 = vdwg.mxu0
        %863 = vmatprep.subr.mxu0 0.0
        %864 = vmatpush1.xpose.msra.mxu0 %v571
        %865 = vmatprep.subr.mxu0 0.0
        %866 = vmatpush1.xpose.msra.mxu0 0.0
        %867 = vmatprep.subr.mxu0 0.0
        %868 = vmatpush1.xpose.msra.mxu0 0.0
        %869 = vmatprep.subr.mxu0 0.0
        %870 = vmatpush1.xpose.msra.mxu0 0.0
        %871 = vmatprep.subr.mxu0 0.0
        %872 = vmatpush1.xpose.msra.mxu0 0.0
        %873 = vmatprep.subr.mxu0 0.0
        %874 = vmatpush1.xpose.msra.mxu0 0.0
        %875 = vmatprep.subr.mxu0 0.0
        %876 = vmatpush1.xpose.msra.mxu0 0.0
        %877 = vmatprep.subr.mxu0 0.0
        %878 = vmatpush1.xpose.msra.mxu0 0.0
        %879 = vmatprep.subr.mxu0 0.0
        %880 = vmatpush1.xpose.msra.mxu0 0.0
        %881 = vmatprep.subr.mxu0 0.0
        %882 = vmatpush1.xpose.msra.mxu0 0.0
        %883 = vmatprep.subr.mxu0 0.0
        %884 = vmatpush1.xpose.msra.mxu0 0.0
        %885 = vmatprep.subr.mxu0 0.0
        %886 = vmatpush1.xpose.msra.mxu0 0.0
        %887 = vmatprep.subr.mxu0 0.0
        %888 = vmatpush1.xpose.msra.mxu0 0.0
        %889 = vmatprep.subr.mxu0 0.0
        %890 = vmatpush1.xpose.msra.mxu0 0.0
        %891 = vmatprep.subr.mxu0 0.0
        %892 = vmatpush1.xpose.msra.mxu0 0.0
        %893 = vmatprep.subr.mxu0 0.0
        %894 = vmatpush1.xpose.msra.mxu0 0.0
        %895 = vmatprep.subr.mxu0 0.0
        %896 = vmatpush1.xpose.msra.mxu0 0.0
        %897 = vmatprep.subr.mxu0 0.0
        %898 = vmatpush1.xpose.msra.mxu0 0.0
        %899 = vmatprep.subr.mxu0 0.0
        %900 = vmatpush1.xpose.msra.mxu0 0.0
        %901 = vmatprep.subr.mxu0 0.0
        %902 = vmatpush1.xpose.msra.mxu0 0.0
        %903 = vmatprep.subr.mxu0 0.0
        %904 = vmatpush1.xpose.msra.mxu0 0.0
        %905 = vmatprep.subr.mxu0 0.0
        %906 = vmatpush1.xpose.msra.mxu0 0.0
        %907 = vmatprep.subr.mxu0 0.0
        %908 = vmatpush1.xpose.msra.mxu0 0.0
        %909 = vmatprep.subr.mxu0 0.0
        %910 = vmatpush1.xpose.msra.mxu0 0.0
        %911 = vmatprep.subr.mxu0 0.0
        %912 = vmatpush1.xpose.msra.mxu0 0.0
        %913 = vmatprep.subr.mxu0 0.0
        %914 = vmatpush1.xpose.msra.mxu0 0.0
        %915 = vmatprep.subr.mxu0 0.0
        %916 = vmatpush1.xpose.msra.mxu0 0.0
        %917 = vmatprep.subr.mxu0 0.0
        %918 = vmatpush1.xpose.msra.mxu0 0.0
        %919 = vmatprep.subr.mxu0 0.0
        %920 = vmatpush1.xpose.msra.mxu0 0.0
        %921 = vmatprep.subr.mxu0 0.0
        %922 = vmatpush1.xpose.msra.mxu0 0.0
        %923 = vmatprep.subr.mxu0 0.0
        %924 = vmatpush1.xpose.msra.mxu0 0.0
        %925 = vmatprep.subr.mxu0 0.0
        %926 = vmatpush1.xpose.msra.mxu0 0.0
        %927 = vmatprep.mubr.f32.mxu0 0.0
        %928 = vmatmul.mubr.f32.gmra.mrb[0].mxu0 %v563
        %v929 = vpop.f32.mrb[0].mxu0
        %v930 = vadd.f32 0.0, %v929
        %v931 = vpop.f32.mrb[0].mxu0
        %932 = vdwg.mxu0
        %933 = vmatprep.subr.mxu0 0.0
        %934 = vmatpush1.xpose.msra.mxu0 %v572
        %935 = vmatprep.subr.mxu0 0.0
        %936 = vmatpush1.xpose.msra.mxu0 0.0
        %937 = vmatprep.subr.mxu0 0.0
        %938 = vmatpush1.xpose.msra.mxu0 0.0
        %939 = vmatprep.subr.mxu0 0.0
        %940 = vmatpush1.xpose.msra.mxu0 0.0
        %941 = vmatprep.subr.mxu0 0.0
        %942 = vmatpush1.xpose.msra.mxu0 0.0
        %943 = vmatprep.subr.mxu0 0.0
        %944 = vmatpush1.xpose.msra.mxu0 0.0
        %945 = vmatprep.subr.mxu0 0.0
        %946 = vmatpush1.xpose.msra.mxu0 0.0
        %947 = vmatprep.subr.mxu0 0.0
        %948 = vmatpush1.xpose.msra.mxu0 0.0
        %949 = vmatprep.subr.mxu0 0.0
        %950 = vmatpush1.xpose.msra.mxu0 0.0
        %951 = vmatprep.subr.mxu0 0.0
        %952 = vmatpush1.xpose.msra.mxu0 0.0
        %953 = vmatprep.subr.mxu0 0.0
        %954 = vmatpush1.xpose.msra.mxu0 0.0
        %955 = vmatprep.subr.mxu0 0.0
        %956 = vmatpush1.xpose.msra.mxu0 0.0
        %957 = vmatprep.subr.mxu0 0.0
        %958 = vmatpush1.xpose.msra.mxu0 0.0
        %959 = vmatprep.subr.mxu0 0.0
        %960 = vmatpush1.xpose.msra.mxu0 0.0
        %961 = vmatprep.subr.mxu0 0.0
        %962 = vmatpush1.xpose.msra.mxu0 0.0
        %963 = vmatprep.subr.mxu0 0.0
        %964 = vmatpush1.xpose.msra.mxu0 0.0
        %965 = vmatprep.subr.mxu0 0.0
        %966 = vmatpush1.xpose.msra.mxu0 0.0
        %967 = vmatprep.subr.mxu0 0.0
        %968 = vmatpush1.xpose.msra.mxu0 0.0
        %969 = vmatprep.subr.mxu0 0.0
        %970 = vmatpush1.xpose.msra.mxu0 0.0
        %971 = vmatprep.subr.mxu0 0.0
        %972 = vmatpush1.xpose.msra.mxu0 0.0
        %973 = vmatprep.subr.mxu0 0.0
        %974 = vmatpush1.xpose.msra.mxu0 0.0
        %975 = vmatprep.subr.mxu0 0.0
        %976 = vmatpush1.xpose.msra.mxu0 0.0
        %977 = vmatprep.subr.mxu0 0.0
        %978 = vmatpush1.xpose.msra.mxu0 0.0
        %979 = vmatprep.subr.mxu0 0.0
        %980 = vmatpush1.xpose.msra.mxu0 0.0
        %981 = vmatprep.subr.mxu0 0.0
        %982 = vmatpush1.xpose.msra.mxu0 0.0
        %983 = vmatprep.subr.mxu0 0.0
        %984 = vmatpush1.xpose.msra.mxu0 0.0
        %985 = vmatprep.subr.mxu0 0.0
        %986 = vmatpush1.xpose.msra.mxu0 0.0
        %987 = vmatprep.subr.mxu0 0.0
        %988 = vmatpush1.xpose.msra.mxu0 0.0
        %989 = vmatprep.subr.mxu0 0.0
        %990 = vmatpush1.xpose.msra.mxu0 0.0
        %991 = vmatprep.subr.mxu0 0.0
        %992 = vmatpush1.xpose.msra.mxu0 0.0
        %993 = vmatprep.subr.mxu0 0.0
        %994 = vmatpush1.xpose.msra.mxu0 0.0
        %995 = vmatprep.subr.mxu0 0.0
        %996 = vmatpush1.xpose.msra.mxu0 0.0
        %997 = vmatprep.mubr.f32.mxu0 0.0
        %998 = vmatmul.mubr.f32.gmra.mrb[0].mxu0 %v564
        %v999 = vpop.f32.mrb[0].mxu0
        %v1000 = vadd.f32 0.0, %v999
        %v1001 = vpop.f32.mrb[0].mxu0
        %1002 = vdwg.mxu0
        %1003 = vmatprep.subr.mxu0 0.0
        %1004 = vmatpush1.xpose.msra.mxu0 %v573
        %1005 = vmatprep.subr.mxu0 0.0
        %1006 = vmatpush1.xpose.msra.mxu0 0.0
        %1007 = vmatprep.subr.mxu0 0.0
        %1008 = vmatpush1.xpose.msra.mxu0 0.0
        %1009 = vmatprep.subr.mxu0 0.0
        %1010 = vmatpush1.xpose.msra.mxu0 0.0
        %1011 = vmatprep.subr.mxu0 0.0
        %1012 = vmatpush1.xpose.msra.mxu0 0.0
        %1013 = vmatprep.subr.mxu0 0.0
        %1014 = vmatpush1.xpose.msra.mxu0 0.0
        %1015 = vmatprep.subr.mxu0 0.0
        %1016 = vmatpush1.xpose.msra.mxu0 0.0
        %1017 = vmatprep.subr.mxu0 0.0
        %1018 = vmatpush1.xpose.msra.mxu0 0.0
        %1019 = vmatprep.subr.mxu0 0.0
        %1020 = vmatpush1.xpose.msra.mxu0 0.0
        %1021 = vmatprep.subr.mxu0 0.0
        %1022 = vmatpush1.xpose.msra.mxu0 0.0
        %1023 = vmatprep.subr.mxu0 0.0
        %1024 = vmatpush1.xpose.msra.mxu0 0.0
        %1025 = vmatprep.subr.mxu0 0.0
        %1026 = vmatpush1.xpose.msra.mxu0 0.0
        %1027 = vmatprep.subr.mxu0 0.0
        %1028 = vmatpush1.xpose.msra.mxu0 0.0
        %1029 = vmatprep.subr.mxu0 0.0
        %1030 = vmatpush1.xpose.msra.mxu0 0.0
        %1031 = vmatprep.subr.mxu0 0.0
        %1032 = vmatpush1.xpose.msra.mxu0 0.0
        %1033 = vmatprep.subr.mxu0 0.0
        %1034 = vmatpush1.xpose.msra.mxu0 0.0
        %1035 = vmatprep.subr.mxu0 0.0
        %1036 = vmatpush1.xpose.msra.mxu0 0.0
        %1037 = vmatprep.subr.mxu0 0.0
        %1038 = vmatpush1.xpose.msra.mxu0 0.0
        %1039 = vmatprep.subr.mxu0 0.0
        %1040 = vmatpush1.xpose.msra.mxu0 0.0
        %1041 = vmatprep.subr.mxu0 0.0
        %1042 = vmatpush1.xpose.msra.mxu0 0.0
        %1043 = vmatprep.subr.mxu0 0.0
        %1044 = vmatpush1.xpose.msra.mxu0 0.0
        %1045 = vmatprep.subr.mxu0 0.0
        %1046 = vmatpush1.xpose.msra.mxu0 0.0
        %1047 = vmatprep.subr.mxu0 0.0
        %1048 = vmatpush1.xpose.msra.mxu0 0.0
        %1049 = vmatprep.subr.mxu0 0.0
        %1050 = vmatpush1.xpose.msra.mxu0 0.0
        %1051 = vmatprep.subr.mxu0 0.0
        %1052 = vmatpush1.xpose.msra.mxu0 0.0
        %1053 = vmatprep.subr.mxu0 0.0
        %1054 = vmatpush1.xpose.msra.mxu0 0.0
        %1055 = vmatprep.subr.mxu0 0.0
        %1056 = vmatpush1.xpose.msra.mxu0 0.0
        %1057 = vmatprep.subr.mxu0 0.0
        %1058 = vmatpush1.xpose.msra.mxu0 0.0
        %1059 = vmatprep.subr.mxu0 0.0
        %1060 = vmatpush1.xpose.msra.mxu0 0.0
        %1061 = vmatprep.subr.mxu0 0.0
        %1062 = vmatpush1.xpose.msra.mxu0 0.0
        %1063 = vmatprep.subr.mxu0 0.0
        %1064 = vmatpush1.xpose.msra.mxu0 0.0
        %1065 = vmatprep.subr.mxu0 0.0
        %1066 = vmatpush1.xpose.msra.mxu0 0.0
        %1067 = vmatprep.mubr.f32.mxu0 0.0
        %1068 = vmatmul.mubr.f32.gmra.mrb[0].mxu0 %v565
        %v1069 = vpop.f32.mrb[0].mxu0
        %v1070 = vadd.f32 0.0, %v1069
        %v1071 = vpop.f32.mrb[0].mxu0
        %1072 = vdwg.mxu0
        %1073 = vmatprep.subr.mxu0 0.0
        %1074 = vmatpush1.xpose.msra.mxu0 %v574
        %1075 = vmatprep.subr.mxu0 0.0
        %1076 = vmatpush1.xpose.msra.mxu0 0.0
        %1077 = vmatprep.subr.mxu0 0.0
        %1078 = vmatpush1.xpose.msra.mxu0 0.0
        %1079 = vmatprep.subr.mxu0 0.0
        %1080 = vmatpush1.xpose.msra.mxu0 0.0
        %1081 = vmatprep.subr.mxu0 0.0
        %1082 = vmatpush1.xpose.msra.mxu0 0.0
        %1083 = vmatprep.subr.mxu0 0.0
        %1084 = vmatpush1.xpose.msra.mxu0 0.0
        %1085 = vmatprep.subr.mxu0 0.0
        %1086 = vmatpush1.xpose.msra.mxu0 0.0
        %1087 = vmatprep.subr.mxu0 0.0
        %1088 = vmatpush1.xpose.msra.mxu0 0.0
        %1089 = vmatprep.subr.mxu0 0.0
        %1090 = vmatpush1.xpose.msra.mxu0 0.0
        %1091 = vmatprep.subr.mxu0 0.0
        %1092 = vmatpush1.xpose.msra.mxu0 0.0
        %1093 = vmatprep.subr.mxu0 0.0
        %1094 = vmatpush1.xpose.msra.mxu0 0.0
        %1095 = vmatprep.subr.mxu0 0.0
        %1096 = vmatpush1.xpose.msra.mxu0 0.0
        %1097 = vmatprep.subr.mxu0 0.0
        %1098 = vmatpush1.xpose.msra.mxu0 0.0
        %1099 = vmatprep.subr.mxu0 0.0
        %1100 = vmatpush1.xpose.msra.mxu0 0.0
        %1101 = vmatprep.subr.mxu0 0.0
        %1102 = vmatpush1.xpose.msra.mxu0 0.0
        %1103 = vmatprep.subr.mxu0 0.0
        %1104 = vmatpush1.xpose.msra.mxu0 0.0
        %1105 = vmatprep.subr.mxu0 0.0
        %1106 = vmatpush1.xpose.msra.mxu0 0.0
        %1107 = vmatprep.subr.mxu0 0.0
        %1108 = vmatpush1.xpose.msra.mxu0 0.0
        %1109 = vmatprep.subr.mxu0 0.0
        %1110 = vmatpush1.xpose.msra.mxu0 0.0
        %1111 = vmatprep.subr.mxu0 0.0
        %1112 = vmatpush1.xpose.msra.mxu0 0.0
        %1113 = vmatprep.subr.mxu0 0.0
        %1114 = vmatpush1.xpose.msra.mxu0 0.0
        %1115 = vmatprep.subr.mxu0 0.0
        %1116 = vmatpush1.xpose.msra.mxu0 0.0
        %1117 = vmatprep.subr.mxu0 0.0
        %1118 = vmatpush1.xpose.msra.mxu0 0.0
        %1119 = vmatprep.subr.mxu0 0.0
        %1120 = vmatpush1.xpose.msra.mxu0 0.0
        %1121 = vmatprep.subr.mxu0 0.0
        %1122 = vmatpush1.xpose.msra.mxu0 0.0
        %1123 = vmatprep.subr.mxu0 0.0
        %1124 = vmatpush1.xpose.msra.mxu0 0.0
        %1125 = vmatprep.subr.mxu0 0.0
        %1126 = vmatpush1.xpose.msra.mxu0 0.0
        %1127 = vmatprep.subr.mxu0 0.0
        %1128 = vmatpush1.xpose.msra.mxu0 0.0
        %1129 = vmatprep.subr.mxu0 0.0
        %1130 = vmatpush1.xpose.msra.mxu0 0.0
        %1131 = vmatprep.subr.mxu0 0.0
        %1132 = vmatpush1.xpose.msra.mxu0 0.0
        %1133 = vmatprep.subr.mxu0 0.0
        %1134 = vmatpush1.xpose.msra.mxu0 0.0
        %1135 = vmatprep.subr.mxu0 0.0
        %1136 = vmatpush1.xpose.msra.mxu0 0.0
        %1137 = vmatprep.mubr.f32.mxu0 0.0
        %1138 = vmatmul.mubr.f32.gmra.mrb[0].mxu0 %v566
        %v1139 = vpop.f32.mrb[0].mxu0
        %v1140 = vadd.f32 0.0, %v1139
        %v1141 = vpop.f32.mrb[0].mxu0
        %1142 = vdwg.mxu0
        %v1143 = vmul.f32 %v650, 0.25
        %v1144 = vmul.f32 %v720, 0.25
        %v1145 = vmul.f32 %v790, 0.25
        %v1146 = vmul.f32 %v860, 0.25
        %v1147 = vmul.f32 %v930, 0.25
        %v1148 = vmul.f32 %v1000, 0.25
        %v1149 = vmul.f32 %v1070, 0.25
        %v1150 = vmul.f32 %v1140, 0.25
        %vm1151 = vcmask 64512
        %v1152 = vsel %vm1151, %v1143, -inf
        %1153 = vmax.xlane.f32.xlu0 %v1152
        %v1154 = vpop.xlane.xlu0 %1153
        %v1155 = vsel %vm1151, %v1144, -inf
        %1156 = vmax.xlane.f32.xlu0 %v1155
        %v1157 = vpop.xlane.xlu0 %1156
        %v1158 = vsel %vm1151, %v1145, -inf
        %1159 = vmax.xlane.f32.xlu0 %v1158
        %v1160 = vpop.xlane.xlu0 %1159
        %v1161 = vsel %vm1151, %v1146, -inf
        %1162 = vmax.xlane.f32.xlu0 %v1161
        %v1163 = vpop.xlane.xlu0 %1162
        %v1164 = vsel %vm1151, %v1147, -inf
        %1165 = vmax.xlane.f32.xlu0 %v1164
        %v1166 = vpop.xlane.xlu0 %1165
        %v1167 = vsel %vm1151, %v1148, -inf
        %1168 = vmax.xlane.f32.xlu0 %v1167
        %v1169 = vpop.xlane.xlu0 %1168
        %v1170 = vsel %vm1151, %v1149, -inf
        %1171 = vmax.xlane.f32.xlu0 %v1170
        %v1172 = vpop.xlane.xlu0 %1171
        %v1173 = vsel %vm1151, %v1150, -inf
        %1174 = vmax.xlane.f32.xlu0 %v1173
        %v1175 = vpop.xlane.xlu0 %1174
        %v1176 = vsub.f32 %v1143, %v1154
        %v1177 = vsub.f32 %v1144, %v1157
        %v1178 = vsub.f32 %v1145, %v1160
        %v1179 = vsub.f32 %v1146, %v1163
        %v1180 = vsub.f32 %v1147, %v1166
        %v1181 = vsub.f32 %v1148, %v1169
        %v1182 = vsub.f32 %v1149, %v1172
        %v1183 = vsub.f32 %v1150, %v1175
        %v1184 = vmul.f32 %v1176, 1.442695
        %v1185 = vpow.pop %v1184
        %v1186 = vmul.f32 %v1177, 1.442695
        %v1187 = vpow.pop %v1186
        %v1188 = vmul.f32 %v1178, 1.442695
        %v1189 = vpow.pop %v1188
        %v1190 = vmul.f32 %v1179, 1.442695
        %v1191 = vpow.pop %v1190
        %v1192 = vmul.f32 %v1180, 1.442695
        %v1193 = vpow.pop %v1192
        %v1194 = vmul.f32 %v1181, 1.442695
        %v1195 = vpow.pop %v1194
        %v1196 = vmul.f32 %v1182, 1.442695
        %v1197 = vpow.pop %v1196
        %v1198 = vmul.f32 %v1183, 1.442695
        %v1199 = vpow.pop %v1198
        %v1200 = vsel %vm1151, %v1185, 0.0
        %1201 = vadd.xlane.f32.xlu0 %v1200
        %v1202 = vpop.xlane.xlu0 %1201
        %v1203 = vsel %vm1151, %v1187, 0.0
        %1204 = vadd.xlane.f32.xlu0 %v1203
        %v1205 = vpop.xlane.xlu0 %1204
        %v1206 = vsel %vm1151, %v1189, 0.0
        %1207 = vadd.xlane.f32.xlu0 %v1206
        %v1208 = vpop.xlane.xlu0 %1207
        %v1209 = vsel %vm1151, %v1191, 0.0
        %1210 = vadd.xlane.f32.xlu0 %v1209
        %v1211 = vpop.xlane.xlu0 %1210
        %v1212 = vsel %vm1151, %v1193, 0.0
        %1213 = vadd.xlane.f32.xlu0 %v1212
        %v1214 = vpop.xlane.xlu0 %1213
        %v1215 = vsel %vm1151, %v1195, 0.0
        %1216 = vadd.xlane.f32.xlu0 %v1215
        %v1217 = vpop.xlane.xlu0 %1216
        %v1218 = vsel %vm1151, %v1197, 0.0
        %1219 = vadd.xlane.f32.xlu0 %v1218
        %v1220 = vpop.xlane.xlu0 %1219
        %v1221 = vsel %vm1151, %v1199, 0.0
        %1222 = vadd.xlane.f32.xlu0 %v1221
        %v1223 = vpop.xlane.xlu0 %1222
        %v1224 = vrcp.pop %v1202
        %v1225 = vrcp.pop %v1205
        %v1226 = vrcp.pop %v1208
        %v1227 = vrcp.pop %v1211
        %v1228 = vrcp.pop %v1214
        %v1229 = vrcp.pop %v1217
        %v1230 = vrcp.pop %v1220
        %v1231 = vrcp.pop %v1223
        %v1232 = vmul.f32 %v1185, %v1224
        %v1233 = vmul.f32 %v1187, %v1225
        %v1234 = vmul.f32 %v1189, %v1226
        %v1235 = vmul.f32 %v1191, %v1227
        %v1236 = vmul.f32 %v1193, %v1228
        %v1237 = vmul.f32 %v1195, %v1229
        %v1238 = vmul.f32 %v1197, %v1230
        %v1239 = vmul.f32 %v1199, %v1231
        %v1241 = vsel %vm1151, %v1232, 0
        %1243 = vmatprep.subr.mxu0 0.0
        %1244 = vmatpush1.msra.mxu0 %v575
        %1245 = vmatprep.subr.mxu0 0.0
        %1246 = vmatpush1.msra.mxu0 0.0
        %1247 = vmatprep.subr.mxu0 0.0
        %1248 = vmatpush1.msra.mxu0 0.0
        %1249 = vmatprep.subr.mxu0 0.0
        %1250 = vmatpush1.msra.mxu0 0.0
        %1251 = vmatprep.subr.mxu0 0.0
        %1252 = vmatpush1.msra.mxu0 0.0
        %1253 = vmatprep.subr.mxu0 0.0
        %1254 = vmatpush1.msra.mxu0 0.0
        %1255 = vmatprep.subr.mxu0 0.0
        %1256 = vmatpush1.msra.mxu0 0.0
        %1257 = vmatprep.subr.mxu0 0.0
        %1258 = vmatpush1.msra.mxu0 0.0
        %1259 = vmatprep.subr.mxu0 0.0
        %1260 = vmatpush1.msra.mxu0 0.0
        %1261 = vmatprep.subr.mxu0 0.0
        %1262 = vmatpush1.msra.mxu0 0.0
        %1263 = vmatprep.subr.mxu0 0.0
        %1264 = vmatpush1.msra.mxu0 0.0
        %1265 = vmatprep.subr.mxu0 0.0
        %1266 = vmatpush1.msra.mxu0 0.0
        %1267 = vmatprep.subr.mxu0 0.0
        %1268 = vmatpush1.msra.mxu0 0.0
        %1269 = vmatprep.subr.mxu0 0.0
        %1270 = vmatpush1.msra.mxu0 0.0
        %1271 = vmatprep.subr.mxu0 0.0
        %1272 = vmatpush1.msra.mxu0 0.0
        %1273 = vmatprep.subr.mxu0 0.0
        %1274 = vmatpush1.msra.mxu0 0.0
        %1275 = vmatprep.subr.mxu0 0.0
        %1276 = vmatpush1.msra.mxu0 0.0
        %1277 = vmatprep.subr.mxu0 0.0
        %1278 = vmatpush1.msra.mxu0 0.0
        %1279 = vmatprep.subr.mxu0 0.0
        %1280 = vmatpush1.msra.mxu0 0.0
        %1281 = vmatprep.subr.mxu0 0.0
        %1282 = vmatpush1.msra.mxu0 0.0
        %1283 = vmatprep.subr.mxu0 0.0
        %1284 = vmatpush1.msra.mxu0 0.0
        %1285 = vmatprep.subr.mxu0 0.0
        %1286 = vmatpush1.msra.mxu0 0.0
        %1287 = vmatprep.subr.mxu0 0.0
        %1288 = vmatpush1.msra.mxu0 0.0
        %1289 = vmatprep.subr.mxu0 0.0
        %1290 = vmatpush1.msra.mxu0 0.0
        %1291 = vmatprep.subr.mxu0 0.0
        %1292 = vmatpush1.msra.mxu0 0.0
        %1293 = vmatprep.subr.mxu0 0.0
        %1294 = vmatpush1.msra.mxu0 0.0
        %1295 = vmatprep.subr.mxu0 0.0
        %1296 = vmatpush1.msra.mxu0 0.0
        %1297 = vmatprep.subr.mxu0 0.0
        %1298 = vmatpush1.msra.mxu0 0.0
        %1299 = vmatprep.subr.mxu0 0.0
        %1300 = vmatpush1.msra.mxu0 0.0
        %1301 = vmatprep.subr.mxu0 0.0
        %1302 = vmatpush1.msra.mxu0 0.0
        %1303 = vmatprep.subr.mxu0 0.0
        %1304 = vmatpush1.msra.mxu0 0.0
        %1305 = vmatprep.subr.mxu0 0.0
        %1306 = vmatpush1.msra.mxu0 0.0
        %1307 = vmatprep.mubr.f32.mxu0 0.0
        %1308 = vmatmul.mubr.f32.gmra.mrb[0].mxu0 %v1241
        %v1309 = vpop.f32.mrb[0].mxu0
        %v1310 = vadd.f32 0.0, %v1309
        %v1311 = vpop.f32.mrb[0].mxu0
        %1312 = vdwg.mxu0
        %v1314 = vsel %vm1151, %v1233, 0
        %1316 = vmatprep.subr.mxu0 0.0
        %1317 = vmatpush1.msra.mxu0 %v576
        %1318 = vmatprep.subr.mxu0 0.0
        %1319 = vmatpush1.msra.mxu0 0.0
        %1320 = vmatprep.subr.mxu0 0.0
        %1321 = vmatpush1.msra.mxu0 0.0
        %1322 = vmatprep.subr.mxu0 0.0
        %1323 = vmatpush1.msra.mxu0 0.0
        %1324 = vmatprep.subr.mxu0 0.0
        %1325 = vmatpush1.msra.mxu0 0.0
        %1326 = vmatprep.subr.mxu0 0.0
        %1327 = vmatpush1.msra.mxu0 0.0
        %1328 = vmatprep.subr.mxu0 0.0
        %1329 = vmatpush1.msra.mxu0 0.0
        %1330 = vmatprep.subr.mxu0 0.0
        %1331 = vmatpush1.msra.mxu0 0.0
        %1332 = vmatprep.subr.mxu0 0.0
        %1333 = vmatpush1.msra.mxu0 0.0
        %1334 = vmatprep.subr.mxu0 0.0
        %1335 = vmatpush1.msra.mxu0 0.0
        %1336 = vmatprep.subr.mxu0 0.0
        %1337 = vmatpush1.msra.mxu0 0.0
        %1338 = vmatprep.subr.mxu0 0.0
        %1339 = vmatpush1.msra.mxu0 0.0
        %1340 = vmatprep.subr.mxu0 0.0
        %1341 = vmatpush1.msra.mxu0 0.0
        %1342 = vmatprep.subr.mxu0 0.0
        %1343 = vmatpush1.msra.mxu0 0.0
        %1344 = vmatprep.subr.mxu0 0.0
        %1345 = vmatpush1.msra.mxu0 0.0
        %1346 = vmatprep.subr.mxu0 0.0
        %1347 = vmatpush1.msra.mxu0 0.0
        %1348 = vmatprep.subr.mxu0 0.0
        %1349 = vmatpush1.msra.mxu0 0.0
        %1350 = vmatprep.subr.mxu0 0.0
        %1351 = vmatpush1.msra.mxu0 0.0
        %1352 = vmatprep.subr.mxu0 0.0
        %1353 = vmatpush1.msra.mxu0 0.0
        %1354 = vmatprep.subr.mxu0 0.0
        %1355 = vmatpush1.msra.mxu0 0.0
        %1356 = vmatprep.subr.mxu0 0.0
        %1357 = vmatpush1.msra.mxu0 0.0
        %1358 = vmatprep.subr.mxu0 0.0
        %1359 = vmatpush1.msra.mxu0 0.0
        %1360 = vmatprep.subr.mxu0 0.0
        %1361 = vmatpush1.msra.mxu0 0.0
        %1362 = vmatprep.subr.mxu0 0.0
        %1363 = vmatpush1.msra.mxu0 0.0
        %1364 = vmatprep.subr.mxu0 0.0
        %1365 = vmatpush1.msra.mxu0 0.0
        %1366 = vmatprep.subr.mxu0 0.0
        %1367 = vmatpush1.msra.mxu0 0.0
        %1368 = vmatprep.subr.mxu0 0.0
        %1369 = vmatpush1.msra.mxu0 0.0
        %1370 = vmatprep.subr.mxu0 0.0
        %1371 = vmatpush1.msra.mxu0 0.0
        %1372 = vmatprep.subr.mxu0 0.0
        %1373 = vmatpush1.msra.mxu0 0.0
        %1374 = vmatprep.subr.mxu0 0.0
        %1375 = vmatpush1.msra.mxu0 0.0
        %1376 = vmatprep.subr.mxu0 0.0
        %1377 = vmatpush1.msra.mxu0 0.0
        %1378 = vmatprep.subr.mxu0 0.0
        %1379 = vmatpush1.msra.mxu0 0.0
        %1380 = vmatprep.mubr.f32.mxu0 0.0
        %1381 = vmatmul.mubr.f32.gmra.mrb[0].mxu0 %v1314
        %v1382 = vpop.f32.mrb[0].mxu0
        %v1383 = vadd.f32 0.0, %v1382
        %v1384 = vpop.f32.mrb[0].mxu0
        %1385 = vdwg.mxu0
        %v1387 = vsel %vm1151, %v1234, 0
        %1389 = vmatprep.subr.mxu0 0.0
        %1390 = vmatpush1.msra.mxu0 %v577
        %1391 = vmatprep.subr.mxu0 0.0
        %1392 = vmatpush1.msra.mxu0 0.0
        %1393 = vmatprep.subr.mxu0 0.0
        %1394 = vmatpush1.msra.mxu0 0.0
        %1395 = vmatprep.subr.mxu0 0.0
        %1396 = vmatpush1.msra.mxu0 0.0
        %1397 = vmatprep.subr.mxu0 0.0
        %1398 = vmatpush1.msra.mxu0 0.0
        %1399 = vmatprep.subr.mxu0 0.0
        %1400 = vmatpush1.msra.mxu0 0.0
        %1401 = vmatprep.subr.mxu0 0.0
        %1402 = vmatpush1.msra.mxu0 0.0
        %1403 = vmatprep.subr.mxu0 0.0
        %1404 = vmatpush1.msra.mxu0 0.0
        %1405 = vmatprep.subr.mxu0 0.0
        %1406 = vmatpush1.msra.mxu0 0.0
        %1407 = vmatprep.subr.mxu0 0.0
        %1408 = vmatpush1.msra.mxu0 0.0
        %1409 = vmatprep.subr.mxu0 0.0
        %1410 = vmatpush1.msra.mxu0 0.0
        %1411 = vmatprep.subr.mxu0 0.0
        %1412 = vmatpush1.msra.mxu0 0.0
        %1413 = vmatprep.subr.mxu0 0.0
        %1414 = vmatpush1.msra.mxu0 0.0
        %1415 = vmatprep.subr.mxu0 0.0
        %1416 = vmatpush1.msra.mxu0 0.0
        %1417 = vmatprep.subr.mxu0 0.0
        %1418 = vmatpush1.msra.mxu0 0.0
        %1419 = vmatprep.subr.mxu0 0.0
        %1420 = vmatpush1.msra.mxu0 0.0
        %1421 = vmatprep.subr.mxu0 0.0
        %1422 = vmatpush1.msra.mxu0 0.0
        %1423 = vmatprep.subr.mxu0 0.0
        %1424 = vmatpush1.msra.mxu0 0.0
        %1425 = vmatprep.subr.mxu0 0.0
        %1426 = vmatpush1.msra.mxu0 0.0
        %1427 = vmatprep.subr.mxu0 0.0
        %1428 = vmatpush1.msra.mxu0 0.0
        %1429 = vmatprep.subr.mxu0 0.0
        %1430 = vmatpush1.msra.mxu0 0.0
        %1431 = vmatprep.subr.mxu0 0.0
        %1432 = vmatpush1.msra.mxu0 0.0
        %1433 = vmatprep.subr.mxu0 0.0
        %1434 = vmatpush1.msra.mxu0 0.0
        %1435 = vmatprep.subr.mxu0 0.0
        %1436 = vmatpush1.msra.mxu0 0.0
        %1437 = vmatprep.subr.mxu0 0.0
        %1438 = vmatpush1.msra.mxu0 0.0
        %1439 = vmatprep.subr.mxu0 0.0
        %1440 = vmatpush1.msra.mxu0 0.0
        %1441 = vmatprep.subr.mxu0 0.0
        %1442 = vmatpush1.msra.mxu0 0.0
        %1443 = vmatprep.subr.mxu0 0.0
        %1444 = vmatpush1.msra.mxu0 0.0
        %1445 = vmatprep.subr.mxu0 0.0
        %1446 = vmatpush1.msra.mxu0 0.0
        %1447 = vmatprep.subr.mxu0 0.0
        %1448 = vmatpush1.msra.mxu0 0.0
        %1449 = vmatprep.subr.mxu0 0.0
        %1450 = vmatpush1.msra.mxu0 0.0
        %1451 = vmatprep.subr.mxu0 0.0
        %1452 = vmatpush1.msra.mxu0 0.0
        %1453 = vmatprep.mubr.f32.mxu0 0.0
        %1454 = vmatmul.mubr.f32.gmra.mrb[0].mxu0 %v1387
        %v1455 = vpop.f32.mrb[0].mxu0
        %v1456 = vadd.f32 0.0, %v1455
        %v1457 = vpop.f32.mrb[0].mxu0
        %1458 = vdwg.mxu0
        %v1460 = vsel %vm1151, %v1235, 0
        %1462 = vmatprep.subr.mxu0 0.0
        %1463 = vmatpush1.msra.mxu0 %v578
        %1464 = vmatprep.subr.mxu0 0.0
        %1465 = vmatpush1.msra.mxu0 0.0
        %1466 = vmatprep.subr.mxu0 0.0
        %1467 = vmatpush1.msra.mxu0 0.0
        %1468 = vmatprep.subr.mxu0 0.0
        %1469 = vmatpush1.msra.mxu0 0.0
        %1470 = vmatprep.subr.mxu0 0.0
        %1471 = vmatpush1.msra.mxu0 0.0
        %1472 = vmatprep.subr.mxu0 0.0
        %1473 = vmatpush1.msra.mxu0 0.0
        %1474 = vmatprep.subr.mxu0 0.0
        %1475 = vmatpush1.msra.mxu0 0.0
        %1476 = vmatprep.subr.mxu0 0.0
        %1477 = vmatpush1.msra.mxu0 0.0
        %1478 = vmatprep.subr.mxu0 0.0
        %1479 = vmatpush1.msra.mxu0 0.0
        %1480 = vmatprep.subr.mxu0 0.0
        %1481 = vmatpush1.msra.mxu0 0.0
        %1482 = vmatprep.subr.mxu0 0.0
        %1483 = vmatpush1.msra.mxu0 0.0
        %1484 = vmatprep.subr.mxu0 0.0
        %1485 = vmatpush1.msra.mxu0 0.0
        %1486 = vmatprep.subr.mxu0 0.0
        %1487 = vmatpush1.msra.mxu0 0.0
        %1488 = vmatprep.subr.mxu0 0.0
        %1489 = vmatpush1.msra.mxu0 0.0
        %1490 = vmatprep.subr.mxu0 0.0
        %1491 = vmatpush1.msra.mxu0 0.0
        %1492 = vmatprep.subr.mxu0 0.0
        %1493 = vmatpush1.msra.mxu0 0.0
        %1494 = vmatprep.subr.mxu0 0.0
        %1495 = vmatpush1.msra.mxu0 0.0
        %1496 = vmatprep.subr.mxu0 0.0
        %1497 = vmatpush1.msra.mxu0 0.0
        %1498 = vmatprep.subr.mxu0 0.0
        %1499 = vmatpush1.msra.mxu0 0.0
        %1500 = vmatprep.subr.mxu0 0.0
        %1501 = vmatpush1.msra.mxu0 0.0
        %1502 = vmatprep.subr.mxu0 0.0
        %1503 = vmatpush1.msra.mxu0 0.0
        %1504 = vmatprep.subr.mxu0 0.0
        %1505 = vmatpush1.msra.mxu0 0.0
        %1506 = vmatprep.subr.mxu0 0.0
        %1507 = vmatpush1.msra.mxu0 0.0
        %1508 = vmatprep.subr.mxu0 0.0
        %1509 = vmatpush1.msra.mxu0 0.0
        %1510 = vmatprep.subr.mxu0 0.0
        %1511 = vmatpush1.msra.mxu0 0.0
        %1512 = vmatprep.subr.mxu0 0.0
        %1513 = vmatpush1.msra.mxu0 0.0
        %1514 = vmatprep.subr.mxu0 0.0
        %1515 = vmatpush1.msra.mxu0 0.0
        %1516 = vmatprep.subr.mxu0 0.0
        %1517 = vmatpush1.msra.mxu0 0.0
        %1518 = vmatprep.subr.mxu0 0.0
        %1519 = vmatpush1.msra.mxu0 0.0
        %1520 = vmatprep.subr.mxu0 0.0
        %1521 = vmatpush1.msra.mxu0 0.0
        %1522 = vmatprep.subr.mxu0 0.0
        %1523 = vmatpush1.msra.mxu0 0.0
        %1524 = vmatprep.subr.mxu0 0.0
        %1525 = vmatpush1.msra.mxu0 0.0
        %1526 = vmatprep.mubr.f32.mxu0 0.0
        %1527 = vmatmul.mubr.f32.gmra.mrb[0].mxu0 %v1460
        %v1528 = vpop.f32.mrb[0].mxu0
        %v1529 = vadd.f32 0.0, %v1528
        %v1530 = vpop.f32.mrb[0].mxu0
        %1531 = vdwg.mxu0
        %v1533 = vsel %vm1151, %v1236, 0
        %1535 = vmatprep.subr.mxu0 0.0
        %1536 = vmatpush1.msra.mxu0 %v579
        %1537 = vmatprep.subr.mxu0 0.0
        %1538 = vmatpush1.msra.mxu0 0.0
        %1539 = vmatprep.subr.mxu0 0.0
        %1540 = vmatpush1.msra.mxu0 0.0
        %1541 = vmatprep.subr.mxu0 0.0
        %1542 = vmatpush1.msra.mxu0 0.0
        %1543 = vmatprep.subr.mxu0 0.0
        %1544 = vmatpush1.msra.mxu0 0.0
        %1545 = vmatprep.subr.mxu0 0.0
        %1546 = vmatpush1.msra.mxu0 0.0
        %1547 = vmatprep.subr.mxu0 0.0
        %1548 = vmatpush1.msra.mxu0 0.0
        %1549 = vmatprep.subr.mxu0 0.0
        %1550 = vmatpush1.msra.mxu0 0.0
        %1551 = vmatprep.subr.mxu0 0.0
        %1552 = vmatpush1.msra.mxu0 0.0
        %1553 = vmatprep.subr.mxu0 0.0
        %1554 = vmatpush1.msra.mxu0 0.0
        %1555 = vmatprep.subr.mxu0 0.0
        %1556 = vmatpush1.msra.mxu0 0.0
        %1557 = vmatprep.subr.mxu0 0.0
        %1558 = vmatpush1.msra.mxu0 0.0
        %1559 = vmatprep.subr.mxu0 0.0
        %1560 = vmatpush1.msra.mxu0 0.0
        %1561 = vmatprep.subr.mxu0 0.0
        %1562 = vmatpush1.msra.mxu0 0.0
        %1563 = vmatprep.subr.mxu0 0.0
        %1564 = vmatpush1.msra.mxu0 0.0
        %1565 = vmatprep.subr.mxu0 0.0
        %1566 = vmatpush1.msra.mxu0 0.0
        %1567 = vmatprep.subr.mxu0 0.0
        %1568 = vmatpush1.msra.mxu0 0.0
        %1569 = vmatprep.subr.mxu0 0.0
        %1570 = vmatpush1.msra.mxu0 0.0
        %1571 = vmatprep.subr.mxu0 0.0
        %1572 = vmatpush1.msra.mxu0 0.0
        %1573 = vmatprep.subr.mxu0 0.0
        %1574 = vmatpush1.msra.mxu0 0.0
        %1575 = vmatprep.subr.mxu0 0.0
        %1576 = vmatpush1.msra.mxu0 0.0
        %1577 = vmatprep.subr.mxu0 0.0
        %1578 = vmatpush1.msra.mxu0 0.0
        %1579 = vmatprep.subr.mxu0 0.0
        %1580 = vmatpush1.msra.mxu0 0.0
        %1581 = vmatprep.subr.mxu0 0.0
        %1582 = vmatpush1.msra.mxu0 0.0
        %1583 = vmatprep.subr.mxu0 0.0
        %1584 = vmatpush1.msra.mxu0 0.0
        %1585 = vmatprep.subr.mxu0 0.0
        %1586 = vmatpush1.msra.mxu0 0.0
        %1587 = vmatprep.subr.mxu0 0.0
        %1588 = vmatpush1.msra.mxu0 0.0
        %1589 = vmatprep.subr.mxu0 0.0
        %1590 = vmatpush1.msra.mxu0 0.0
        %1591 = vmatprep.subr.mxu0 0.0
        %1592 = vmatpush1.msra.mxu0 0.0
        %1593 = vmatprep.subr.mxu0 0.0
        %1594 = vmatpush1.msra.mxu0 0.0
        %1595 = vmatprep.subr.mxu0 0.0
        %1596 = vmatpush1.msra.mxu0 0.0
        %1597 = vmatprep.subr.mxu0 0.0
        %1598 = vmatpush1.msra.mxu0 0.0
        %1599 = vmatprep.mubr.f32.mxu0 0.0
        %1600 = vmatmul.mubr.f32.gmra.mrb[0].mxu0 %v1533
        %v1601 = vpop.f32.mrb[0].mxu0
        %v1602 = vadd.f32 0.0, %v1601
        %v1603 = vpop.f32.mrb[0].mxu0
        %1604 = vdwg.mxu0
        %v1606 = vsel %vm1151, %v1237, 0
        %1608 = vmatprep.subr.mxu0 0.0
        %1609 = vmatpush1.msra.mxu0 %v580
        %1610 = vmatprep.subr.mxu0 0.0
        %1611 = vmatpush1.msra.mxu0 0.0
        %1612 = vmatprep.subr.mxu0 0.0
        %1613 = vmatpush1.msra.mxu0 0.0
        %1614 = vmatprep.subr.mxu0 0.0
        %1615 = vmatpush1.msra.mxu0 0.0
        %1616 = vmatprep.subr.mxu0 0.0
        %1617 = vmatpush1.msra.mxu0 0.0
        %1618 = vmatprep.subr.mxu0 0.0
        %1619 = vmatpush1.msra.mxu0 0.0
        %1620 = vmatprep.subr.mxu0 0.0
        %1621 = vmatpush1.msra.mxu0 0.0
        %1622 = vmatprep.subr.mxu0 0.0
        %1623 = vmatpush1.msra.mxu0 0.0
        %1624 = vmatprep.subr.mxu0 0.0
        %1625 = vmatpush1.msra.mxu0 0.0
        %1626 = vmatprep.subr.mxu0 0.0
        %1627 = vmatpush1.msra.mxu0 0.0
        %1628 = vmatprep.subr.mxu0 0.0
        %1629 = vmatpush1.msra.mxu0 0.0
        %1630 = vmatprep.subr.mxu0 0.0
        %1631 = vmatpush1.msra.mxu0 0.0
        %1632 = vmatprep.subr.mxu0 0.0
        %1633 = vmatpush1.msra.mxu0 0.0
        %1634 = vmatprep.subr.mxu0 0.0
        %1635 = vmatpush1.msra.mxu0 0.0
        %1636 = vmatprep.subr.mxu0 0.0
        %1637 = vmatpush1.msra.mxu0 0.0
        %1638 = vmatprep.subr.mxu0 0.0
        %1639 = vmatpush1.msra.mxu0 0.0
        %1640 = vmatprep.subr.mxu0 0.0
        %1641 = vmatpush1.msra.mxu0 0.0
        %1642 = vmatprep.subr.mxu0 0.0
        %1643 = vmatpush1.msra.mxu0 0.0
        %1644 = vmatprep.subr.mxu0 0.0
        %1645 = vmatpush1.msra.mxu0 0.0
        %1646 = vmatprep.subr.mxu0 0.0
        %1647 = vmatpush1.msra.mxu0 0.0
        %1648 = vmatprep.subr.mxu0 0.0
        %1649 = vmatpush1.msra.mxu0 0.0
        %1650 = vmatprep.subr.mxu0 0.0
        %1651 = vmatpush1.msra.mxu0 0.0
        %1652 = vmatprep.subr.mxu0 0.0
        %1653 = vmatpush1.msra.mxu0 0.0
        %1654 = vmatprep.subr.mxu0 0.0
        %1655 = vmatpush1.msra.mxu0 0.0
        %1656 = vmatprep.subr.mxu0 0.0
        %1657 = vmatpush1.msra.mxu0 0.0
        %1658 = vmatprep.subr.mxu0 0.0
        %1659 = vmatpush1.msra.mxu0 0.0
        %1660 = vmatprep.subr.mxu0 0.0
        %1661 = vmatpush1.msra.mxu0 0.0
        %1662 = vmatprep.subr.mxu0 0.0
        %1663 = vmatpush1.msra.mxu0 0.0
        %1664 = vmatprep.subr.mxu0 0.0
        %1665 = vmatpush1.msra.mxu0 0.0
        %1666 = vmatprep.subr.mxu0 0.0
        %1667 = vmatpush1.msra.mxu0 0.0
        %1668 = vmatprep.subr.mxu0 0.0
        %1669 = vmatpush1.msra.mxu0 0.0
        %1670 = vmatprep.subr.mxu0 0.0
        %1671 = vmatpush1.msra.mxu0 0.0
        %1672 = vmatprep.mubr.f32.mxu0 0.0
        %1673 = vmatmul.mubr.f32.gmra.mrb[0].mxu0 %v1606
        %v1674 = vpop.f32.mrb[0].mxu0
        %v1675 = vadd.f32 0.0, %v1674
        %v1676 = vpop.f32.mrb[0].mxu0
        %1677 = vdwg.mxu0
        %v1679 = vsel %vm1151, %v1238, 0
        %1681 = vmatprep.subr.mxu0 0.0
        %1682 = vmatpush1.msra.mxu0 %v581
        %1683 = vmatprep.subr.mxu0 0.0
        %1684 = vmatpush1.msra.mxu0 0.0
        %1685 = vmatprep.subr.mxu0 0.0
        %1686 = vmatpush1.msra.mxu0 0.0
        %1687 = vmatprep.subr.mxu0 0.0
        %1688 = vmatpush1.msra.mxu0 0.0
        %1689 = vmatprep.subr.mxu0 0.0
        %1690 = vmatpush1.msra.mxu0 0.0
        %1691 = vmatprep.subr.mxu0 0.0
        %1692 = vmatpush1.msra.mxu0 0.0
        %1693 = vmatprep.subr.mxu0 0.0
        %1694 = vmatpush1.msra.mxu0 0.0
        %1695 = vmatprep.subr.mxu0 0.0
        %1696 = vmatpush1.msra.mxu0 0.0
        %1697 = vmatprep.subr.mxu0 0.0
        %1698 = vmatpush1.msra.mxu0 0.0
        %1699 = vmatprep.subr.mxu0 0.0
        %1700 = vmatpush1.msra.mxu0 0.0
        %1701 = vmatprep.subr.mxu0 0.0
        %1702 = vmatpush1.msra.mxu0 0.0
        %1703 = vmatprep.subr.mxu0 0.0
        %1704 = vmatpush1.msra.mxu0 0.0
        %1705 = vmatprep.subr.mxu0 0.0
        %1706 = vmatpush1.msra.mxu0 0.0
        %1707 = vmatprep.subr.mxu0 0.0
        %1708 = vmatpush1.msra.mxu0 0.0
        %1709 = vmatprep.subr.mxu0 0.0
        %1710 = vmatpush1.msra.mxu0 0.0
        %1711 = vmatprep.subr.mxu0 0.0
        %1712 = vmatpush1.msra.mxu0 0.0
        %1713 = vmatprep.subr.mxu0 0.0
        %1714 = vmatpush1.msra.mxu0 0.0
        %1715 = vmatprep.subr.mxu0 0.0
        %1716 = vmatpush1.msra.mxu0 0.0
        %1717 = vmatprep.subr.mxu0 0.0
        %1718 = vmatpush1.msra.mxu0 0.0
        %1719 = vmatprep.subr.mxu0 0.0
        %1720 = vmatpush1.msra.mxu0 0.0
        %1721 = vmatprep.subr.mxu0 0.0
        %1722 = vmatpush1.msra.mxu0 0.0
        %1723 = vmatprep.subr.mxu0 0.0
        %1724 = vmatpush1.msra.mxu0 0.0
        %1725 = vmatprep.subr.mxu0 0.0
        %1726 = vmatpush1.msra.mxu0 0.0
        %1727 = vmatprep.subr.mxu0 0.0
        %1728 = vmatpush1.msra.mxu0 0.0
        %1729 = vmatprep.subr.mxu0 0.0
        %1730 = vmatpush1.msra.mxu0 0.0
        %1731 = vmatprep.subr.mxu0 0.0
        %1732 = vmatpush1.msra.mxu0 0.0
        %1733 = vmatprep.subr.mxu0 0.0
        %1734 = vmatpush1.msra.mxu0 0.0
        %1735 = vmatprep.subr.mxu0 0.0
        %1736 = vmatpush1.msra.mxu0 0.0
        %1737 = vmatprep.subr.mxu0 0.0
        %1738 = vmatpush1.msra.mxu0 0.0
        %1739 = vmatprep.subr.mxu0 0.0
        %1740 = vmatpush1.msra.mxu0 0.0
        %1741 = vmatprep.subr.mxu0 0.0
        %1742 = vmatpush1.msra.mxu0 0.0
        %1743 = vmatprep.subr.mxu0 0.0
        %1744 = vmatpush1.msra.mxu0 0.0
        %1745 = vmatprep.mubr.f32.mxu0 0.0
        %1746 = vmatmul.mubr.f32.gmra.mrb[0].mxu0 %v1679
        %v1747 = vpop.f32.mrb[0].mxu0
        %v1748 = vadd.f32 0.0, %v1747
        %v1749 = vpop.f32.mrb[0].mxu0
        %1750 = vdwg.mxu0
        %v1752 = vsel %vm1151, %v1239, 0
        %1754 = vmatprep.subr.mxu0 0.0
        %1755 = vmatpush1.msra.mxu0 %v582
        %1756 = vmatprep.subr.mxu0 0.0
        %1757 = vmatpush1.msra.mxu0 0.0
        %1758 = vmatprep.subr.mxu0 0.0
        %1759 = vmatpush1.msra.mxu0 0.0
        %1760 = vmatprep.subr.mxu0 0.0
        %1761 = vmatpush1.msra.mxu0 0.0
        %1762 = vmatprep.subr.mxu0 0.0
        %1763 = vmatpush1.msra.mxu0 0.0
        %1764 = vmatprep.subr.mxu0 0.0
        %1765 = vmatpush1.msra.mxu0 0.0
        %1766 = vmatprep.subr.mxu0 0.0
        %1767 = vmatpush1.msra.mxu0 0.0
        %1768 = vmatprep.subr.mxu0 0.0
        %1769 = vmatpush1.msra.mxu0 0.0
        %1770 = vmatprep.subr.mxu0 0.0
        %1771 = vmatpush1.msra.mxu0 0.0
        %1772 = vmatprep.subr.mxu0 0.0
        %1773 = vmatpush1.msra.mxu0 0.0
        %1774 = vmatprep.subr.mxu0 0.0
        %1775 = vmatpush1.msra.mxu0 0.0
        %1776 = vmatprep.subr.mxu0 0.0
        %1777 = vmatpush1.msra.mxu0 0.0
        %1778 = vmatprep.subr.mxu0 0.0
        %1779 = vmatpush1.msra.mxu0 0.0
        %1780 = vmatprep.subr.mxu0 0.0
        %1781 = vmatpush1.msra.mxu0 0.0
        %1782 = vmatprep.subr.mxu0 0.0
        %1783 = vmatpush1.msra.mxu0 0.0
        %1784 = vmatprep.subr.mxu0 0.0
        %1785 = vmatpush1.msra.mxu0 0.0
        %1786 = vmatprep.subr.mxu0 0.0
        %1787 = vmatpush1.msra.mxu0 0.0
        %1788 = vmatprep.subr.mxu0 0.0
        %1789 = vmatpush1.msra.mxu0 0.0
        %1790 = vmatprep.subr.mxu0 0.0
        %1791 = vmatpush1.msra.mxu0 0.0
        %1792 = vmatprep.subr.mxu0 0.0
        %1793 = vmatpush1.msra.mxu0 0.0
        %1794 = vmatprep.subr.mxu0 0.0
        %1795 = vmatpush1.msra.mxu0 0.0
        %1796 = vmatprep.subr.mxu0 0.0
        %1797 = vmatpush1.msra.mxu0 0.0
        %1798 = vmatprep.subr.mxu0 0.0
        %1799 = vmatpush1.msra.mxu0 0.0
        %1800 = vmatprep.subr.mxu0 0.0
        %1801 = vmatpush1.msra.mxu0 0.0
        %1802 = vmatprep.subr.mxu0 0.0
        %1803 = vmatpush1.msra.mxu0 0.0
        %1804 = vmatprep.subr.mxu0 0.0
        %1805 = vmatpush1.msra.mxu0 0.0
        %1806 = vmatprep.subr.mxu0 0.0
        %1807 = vmatpush1.msra.mxu0 0.0
        %1808 = vmatprep.subr.mxu0 0.0
        %1809 = vmatpush1.msra.mxu0 0.0
        %1810 = vmatprep.subr.mxu0 0.0
        %1811 = vmatpush1.msra.mxu0 0.0
        %1812 = vmatprep.subr.mxu0 0.0
        %1813 = vmatpush1.msra.mxu0 0.0
        %1814 = vmatprep.subr.mxu0 0.0
        %1815 = vmatpush1.msra.mxu0 0.0
        %1816 = vmatprep.subr.mxu0 0.0
        %1817 = vmatpush1.msra.mxu0 0.0
        %1818 = vmatprep.mubr.f32.mxu0 0.0
        %1819 = vmatmul.mubr.f32.gmra.mrb[0].mxu0 %v1752
        %v1820 = vpop.f32.mrb[0].mxu0
        %v1821 = vadd.f32 0.0, %v1820
        %v1822 = vpop.f32.mrb[0].mxu0
        %1823 = vdwg.mxu0
        %v1824 = vadd.f32 %v1310, %v1383
        %v1825 = vadd.f32 %v1824, %v1456
        %v1826 = vadd.f32 %v1825, %v1529
        %v1827 = vadd.f32 %v1826, %v1602
        %v1828 = vadd.f32 %v1827, %v1675
        %v1829 = vadd.f32 %v1828, %v1748
        %v1830 = vadd.f32 %v1829, %v1821
        %v1831 = vld [vmem:[#allocation7] sm:$0xff]
        %v1832 = vld [vmem:[#allocation7 + $0x8] sm:$0xff]
        %v1833 = vld [vmem:[#allocation7 + $0x10] sm:$0xff]
        %v1834 = vld [vmem:[#allocation7 + $0x18] sm:$0xff]
        %v1835 = vld [vmem:[#allocation7 + $0x20] sm:$0xff]
        %v1836 = vld [vmem:[#allocation7 + $0x28] sm:$0xff]
        %v1837 = vld [vmem:[#allocation7 + $0x30] sm:$0xff]
        %v1838 = vld [vmem:[#allocation7 + $0x38] sm:$0xff]
        %v1839 = vld [vmem:[#allocation7 + $0x40] sm:$0xff]
        %v1840 = vld [vmem:[#allocation7 + $0x48] sm:$0xff]
        %v1841 = vld [vmem:[#allocation7 + $0x50] sm:$0xff]
        %v1842 = vld [vmem:[#allocation7 + $0x58] sm:$0xff]
        %v1843 = vld [vmem:[#allocation7 + $0x60] sm:$0xff]
        %v1844 = vld [vmem:[#allocation7 + $0x68] sm:$0xff]
        %v1845 = vld [vmem:[#allocation7 + $0x70] sm:$0xff]
        %v1846 = vld [vmem:[#allocation7 + $0x78] sm:$0xff]
        %v1847 = vld [vmem:[%s4] sm:$0x1]
        %v1849 = vlaneseq
        %v1850 = vshrl.u32 %v1849, 7
        %v1851 = vsub.s32 0, %v1850
        %v1852 = vrot.slane %v1847, %v1851
        %1854 = vmatprep.subr.mxu0 0.0
        %1855 = vmatpush1.msra.mxu0 %v1831
        %1856 = vmatprep.subr.mxu0 0.0
        %1857 = vmatpush1.msra.mxu0 %v1832
        %1858 = vmatprep.subr.mxu0 0.0
        %1859 = vmatpush1.msra.mxu0 %v1833
        %1860 = vmatprep.subr.mxu0 0.0
        %1861 = vmatpush1.msra.mxu0 %v1834
        %1862 = vmatprep.subr.mxu0 0.0
        %1863 = vmatpush1.msra.mxu0 %v1835
        %1864 = vmatprep.subr.mxu0 0.0
        %1865 = vmatpush1.msra.mxu0 %v1836
        %1866 = vmatprep.subr.mxu0 0.0
        %1867 = vmatpush1.msra.mxu0 %v1837
        %1868 = vmatprep.subr.mxu0 0.0
        %1869 = vmatpush1.msra.mxu0 %v1838
        %1870 = vmatprep.subr.mxu0 0.0
        %1871 = vmatpush1.msra.mxu0 %v1839
        %1872 = vmatprep.subr.mxu0 0.0
        %1873 = vmatpush1.msra.mxu0 %v1840
        %1874 = vmatprep.subr.mxu0 0.0
        %1875 = vmatpush1.msra.mxu0 %v1841
        %1876 = vmatprep.subr.mxu0 0.0
        %1877 = vmatpush1.msra.mxu0 %v1842
        %1878 = vmatprep.subr.mxu0 0.0
        %1879 = vmatpush1.msra.mxu0 %v1843
        %1880 = vmatprep.subr.mxu0 0.0
        %1881 = vmatpush1.msra.mxu0 %v1844
        %1882 = vmatprep.subr.mxu0 0.0
        %1883 = vmatpush1.msra.mxu0 %v1845
        %1884 = vmatprep.subr.mxu0 0.0
        %1885 = vmatpush1.msra.mxu0 %v1846
        %1886 = vmatprep.subr.mxu0 0.0
        %1887 = vmatpush1.msra.mxu0 0.0
        %1888 = vmatprep.subr.mxu0 0.0
        %1889 = vmatpush1.msra.mxu0 0.0
        %1890 = vmatprep.subr.mxu0 0.0
        %1891 = vmatpush1.msra.mxu0 0.0
        %1892 = vmatprep.subr.mxu0 0.0
        %1893 = vmatpush1.msra.mxu0 0.0
        %1894 = vmatprep.subr.mxu0 0.0
        %1895 = vmatpush1.msra.mxu0 0.0
        %1896 = vmatprep.subr.mxu0 0.0
        %1897 = vmatpush1.msra.mxu0 0.0
        %1898 = vmatprep.subr.mxu0 0.0
        %1899 = vmatpush1.msra.mxu0 0.0
        %1900 = vmatprep.subr.mxu0 0.0
        %1901 = vmatpush1.msra.mxu0 0.0
        %1902 = vmatprep.subr.mxu0 0.0
        %1903 = vmatpush1.msra.mxu0 0.0
        %1904 = vmatprep.subr.mxu0 0.0
        %1905 = vmatpush1.msra.mxu0 0.0
        %1906 = vmatprep.subr.mxu0 0.0
        %1907 = vmatpush1.msra.mxu0 0.0
        %1908 = vmatprep.subr.mxu0 0.0
        %1909 = vmatpush1.msra.mxu0 0.0
        %1910 = vmatprep.subr.mxu0 0.0
        %1911 = vmatpush1.msra.mxu0 0.0
        %1912 = vmatprep.subr.mxu0 0.0
        %1913 = vmatpush1.msra.mxu0 0.0
        %1914 = vmatprep.subr.mxu0 0.0
        %1915 = vmatpush1.msra.mxu0 0.0
        %1916 = vmatprep.subr.mxu0 0.0
        %1917 = vmatpush1.msra.mxu0 0.0
        %1918 = vmatprep.mubr.f32.mxu0 0.0
        %1919 = vmatmul.mubr.f32.gmra.mrb[0].mxu0 %v1830
        %v1920 = vpop.f32.mrb[0].mxu0
        %v1921 = vadd.f32 %v1852, %v1920
        %v1922 = vpop.f32.mrb[0].mxu0
        %1923 = vdwg.mxu0
        %1924 = vst [vmem:[%s295] sm:$0xff] %v1921
        %s1925 = sand.u32 %s163, 1
        %s1926 = scalar_lea.sflag [#allocation4], %s1925
        %s1927 = sand.u32 %s163, 1
        %s1928 = smul.addr %s1927, 8
        %s1929 = scalar_lea.vmem [#allocation8], %s1928
        // Predicated region
        $region57: #{tpu_custom_call.1} parent=43 // pred_check
          %p1930 = pneg %p173
        $region58: #{tpu_custom_call.1} parent=43 // pred_check_branch
          %1932 = sbr.rel (%p1930) target = $region60
        $region59: #{tpu_custom_call.1} parent=43 // pred_region
          %s1934 = ssub.s32 128, 128
          %1935 = vsyncadd %s1926, %s1934
          %s1936 = smul.addr %s24, 128
          %s1937 = scalar_lea.hbm %s6, %s1936
          %s1939 = sshll.u32 %s1929, 4
          %s1940 = int_to_ptr.vmem [resolvable:$true] %s1939
          %1942 = dma.vmem_to_hbm [thread:$0]  %s1940, 128, %s1937, %s1926
        $region60: #{tpu_custom_call.1} parent=43 // pred_fallthru
          _
      $region44: #{tpu_custom_call.1} parent=5 // pred_fallthru
        _
      %p1943 = scmp.le.s32.totalorder 2, %s19
      // Predicated region
      $region61: #{tpu_custom_call.1} parent=5 // pred_check
        %p1944 = pneg %p1943
      $region62: #{tpu_custom_call.1} parent=5 // pred_check_branch
        %1946 = sbr.rel (%p1944) target = $region64
      $region63: #{tpu_custom_call.1} parent=5 // pred_region
        %s1947 = ssub.s32 %s19, 2
        // Predicated region
        $region65: #{tpu_custom_call.1} parent=63 // pred_check
          %p1948 = pneg %p179
        $region66: #{tpu_custom_call.1} parent=63 // pred_check_branch
          %1950 = sbr.rel (%p1948) target = $region68
        $region67: #{tpu_custom_call.1} parent=63 // pred_region
          %s1951 = sand.u32 %s164, 1
          %s1952 = scalar_lea.sflag [#allocation4], %s1951
          %s1953 = sand.u32 %s164, 1
          %s1954 = smul.addr %s1953, 8
          %s1955 = scalar_lea.vmem [#allocation8], %s1954
          %1956 = dma.done %s1952, 128
        $region68: #{tpu_custom_call.1} parent=63 // pred_fallthru
          _
      $region64: #{tpu_custom_call.1} parent=5 // pred_fallthru
        _
    $region6: #{tpu_custom_call.1} parent=1 // loop_footer
      %s23 = sadd.s32 1, %s19
    $region7: #{tpu_custom_call.1} parent=1 // loop_footer_branch
      %18 = sbr.rel target = $region3
    $region8: #{tpu_custom_call.1} parent=1 // loop_exit
      _
    %1957 = vsyncpa [#allocation3], 1
    %s1958 = scalar_lea.sflag [#allocation3], 1
    %1959 = vsyncpa %s1958, 1
    %1960 = vsyncpa [#allocation6], 1
    %1961 = vsyncpa [#allocation4], 1
    %s1962 = scalar_lea.sflag [#allocation4], 1
    %1963 = vsyncpa %s1962, 1

</llo_original>
